<compile_context>
chip_gen: v7x
topology: tpu7x:2x2x1
jax: 0.10.0
libtpu: 0.0.40
codegen_flags: <defaults>
</compile_context>

<pallas_src>
import jax
import jax.numpy as jnp
from jax.experimental import pallas as pl
from jax.experimental.pallas import tpu as pltpu

_LANE = 128


def _rup(x, m):
    return -(-x // m) * m


def _pad2d(x, rows, cols):
    r, c = x.shape
    return jnp.pad(x, ((0, rows - r), (0, cols - c)))


def _mxu(a, b):
    """bf16 x bf16 matmul with f32 accumulation (used identically in kernels and reference)."""
    return jnp.dot(a.astype(jnp.bfloat16), b.astype(jnp.bfloat16),
                   preferred_element_type=jnp.float32)


# ----------------------------------------------------------------------------
# Stage 1: per-node encoders (enrna / engene) + split-weight en1 "support".
#   s1 = relu(relu(rna@wr1+br1)@wr2+br2) @ we1[:mid]
#      + relu(relu(gene@wg1+bg1)@wg2+bg2) @ we1[mid:]
# ----------------------------------------------------------------------------
def _encoder_kernel(rna_ref, gene_ref,
                    wr1_ref, br1_ref, wr2_ref, br2_ref,
                    wg1_ref, bg1_ref, wg2_ref, bg2_ref,
                    w1a_ref, w1b_ref,
                    s1_ref):
    relu = lambda x: jnp.maximum(x, 0.0)
    h_r = relu(_mxu(rna_ref[...], wr1_ref[...]) + br1_ref[...])
    h_r = relu(_mxu(h_r, wr2_ref[...]) + br2_ref[...])
    h_g = relu(_mxu(gene_ref[...], wg1_ref[...]) + bg1_ref[...])
    h_g = relu(_mxu(h_g, wg2_ref[...]) + bg2_ref[...])
    # concat([h_r, h_g], -1) @ we1  ==  h_r @ we1[:mid] + h_g @ we1[mid:]
    s1 = _mxu(h_r, w1a_ref[...]) + _mxu(h_g, w1b_ref[...])
    s1_ref[...] = s1.astype(s1_ref.dtype)


# ----------------------------------------------------------------------------
# Stage 2: GCN en1 + next support.   s2 = relu(adj @ s1 + be1) @ we2
# ----------------------------------------------------------------------------
def _gcn1_kernel(adj_ref, s1_ref, be1_ref, we2_ref, s2_ref, acc_ref):
    k = pl.program_id(1)

    @pl.when(k == 0)
    def _init():
        acc_ref[...] = jnp.zeros_like(acc_ref)

    acc_ref[...] += jnp.dot(adj_ref[...], s1_ref[...],
                            preferred_element_type=jnp.float32)

    @pl.when(k == pl.num_programs(1) - 1)
    def _finalize():
        d = jnp.maximum(acc_ref[...] + be1_ref[...], 0.0)   # ReLU(GCN en1)
        s2 = _mxu(d, we2_ref[...])
        s2_ref[...] = s2.astype(s2_ref.dtype)


# ----------------------------------------------------------------------------
# Stage 3: GCN en2 + en3 MLP + sigmoid.
#   out = sigmoid( relu( relu(adj @ s2 + be2) @ w31 + b31 ) @ w32 + b32 )
# ----------------------------------------------------------------------------
def _gcn2_tail_kernel(adj_ref, s2_ref, be2_ref,
                      w31_ref, b31_ref, w32_ref, b32_ref,
                      out_ref, acc_ref):
    k = pl.program_id(1)

    @pl.when(k == 0)
    def _init():
        acc_ref[...] = jnp.zeros_like(acc_ref)

    acc_ref[...] += jnp.dot(adj_ref[...], s2_ref[...],
                            preferred_element_type=jnp.float32)

    @pl.when(k == pl.num_programs(1) - 1)
    def _finalize():
        d = jnp.maximum(acc_ref[...] + be2_ref[...], 0.0)   # ReLU(GCN en2)
        h = jnp.maximum(_mxu(d, w31_ref[...]) + b31_ref[...], 0.0)
        o = _mxu(h, w32_ref[...]) + b32_ref[...]
        out_ref[...] = jax.nn.sigmoid(o)


# ----------------------------------------------------------------------------
# Wrapper: padding, tiling, three pallas_calls.
# ----------------------------------------------------------------------------
def g_forward(rna, gene, adj, params, *, block=256):
    """params: dict of weight matrices (in,out) and bias rows (1,out), f32.

    `block` is the node-row / reduction tile; 256-512 fits comfortably within
    the default scoped VMEM on v5e/v6e/v7x at these (128-padded) feature widths.
    """
    f32, bf16 = jnp.float32, jnp.bfloat16

    N, rna_dim = rna.shape
    gene_dim = gene.shape[1]
    mid_dim = params["wr2"].shape[1]
    second_dim = params["we1"].shape[1]

    # Pad feature dims to the 128-lane width (lane-dense matmuls and stores).
    Rp = _rup(rna_dim, _LANE)
    Gp = _rup(gene_dim, _LANE)
    Mp = _rup(mid_dim, _LANE)
    M2p = _rup(2 * mid_dim, _LANE)
    Sp = _rup(second_dim, _LANE)

    bm = bk = block
    Np = _rup(N, block)

    # Zero-pad node rows + feature lanes.  Padded adj rows/cols are zero, so
    # padded nodes contribute nothing to real rows; padded lanes stay zero
    # through zero-padded weights / biases.  adj is the dominant operand ->
    # store it in bf16 (halves its HBM traffic and VMEM footprint).
    rna_p = _pad2d(rna.astype(f32), Np, Rp)
    gene_p = _pad2d(gene.astype(f32), Np, Gp)
    adj_p = _pad2d(adj.astype(f32), Np, Np).astype(bf16)

    p = {k: jnp.asarray(v, f32) for k, v in params.items()}
    wr1 = _pad2d(p["wr1"], Rp, M2p);  br1 = _pad2d(p["br1"], 1, M2p)
    wr2 = _pad2d(p["wr2"], M2p, Mp);  br2 = _pad2d(p["br2"], 1, Mp)
    wg1 = _pad2d(p["wg1"], Gp, M2p);  bg1 = _pad2d(p["bg1"], 1, M2p)
    wg2 = _pad2d(p["wg2"], M2p, Mp);  bg2 = _pad2d(p["bg2"], 1, Mp)
    # split the en1 GCN weight so the kernel never does a lane-level concat
    w1a = _pad2d(p["we1"][:mid_dim, :], Mp, Sp)
    w1b = _pad2d(p["we1"][mid_dim:, :], Mp, Sp)
    be1 = _pad2d(p["be1"], 1, Sp)
    we2 = _pad2d(p["we2"], Sp, Rp);   be2 = _pad2d(p["be2"], 1, Rp)
    w31 = _pad2d(p["w31"], Rp, Mp);   b31 = _pad2d(p["b31"], 1, Mp)
    w32 = _pad2d(p["w32"], Mp, Rp);   b32 = _pad2d(p["b32"], 1, Rp)

    grid_m = Np // bm
    grid_k = Np // bk

    # Constant index_maps keep the (small) weights VMEM-resident across steps.
    def const1(shape):
        return pl.BlockSpec(shape, lambda i: (0, 0))

    def const2(shape):
        return pl.BlockSpec(shape, lambda i, k: (0, 0))

    # ---- stage 1: encoders + split-weight support1 (row-parallel) ----------
    s1 = pl.pallas_call(
        _encoder_kernel,
        out_shape=jax.ShapeDtypeStruct((Np, Sp), bf16),
        grid_spec=pltpu.PrefetchScalarGridSpec(
            num_scalar_prefetch=0,
            grid=(grid_m,),
            in_specs=[
                pl.BlockSpec((bm, Rp), lambda i: (i, 0)),
                pl.BlockSpec((bm, Gp), lambda i: (i, 0)),
                const1((Rp, M2p)), const1((1, M2p)),
                const1((M2p, Mp)), const1((1, Mp)),
                const1((Gp, M2p)), const1((1, M2p)),
                const1((M2p, Mp)), const1((1, Mp)),
                const1((Mp, Sp)), const1((Mp, Sp)),
            ],
            out_specs=pl.BlockSpec((bm, Sp), lambda i: (i, 0)),
        ),
        compiler_params=pltpu.CompilerParams(
            dimension_semantics=("parallel",)),
    )(rna_p, gene_p, wr1, br1, wr2, br2, wg1, bg1, wg2, bg2, w1a, w1b)

    # ---- stage 2: relu(adj @ s1 + be1) @ we2 --------------------------------
    s2 = pl.pallas_call(
        _gcn1_kernel,
        out_shape=jax.ShapeDtypeStruct((Np, Rp), bf16),
        grid_spec=pltpu.PrefetchScalarGridSpec(
            num_scalar_prefetch=0,
            grid=(grid_m, grid_k),
            in_specs=[
                pl.BlockSpec((bm, bk), lambda i, k: (i, k)),   # adj tile
                pl.BlockSpec((bk, Sp), lambda i, k: (k, 0)),   # s1 tile
                const2((1, Sp)),                               # be1
                const2((Sp, Rp)),                              # we2
            ],
            out_specs=pl.BlockSpec((bm, Rp), lambda i, k: (i, 0)),
            scratch_shapes=[pltpu.VMEM((bm, Sp), f32)],
        ),
        compiler_params=pltpu.CompilerParams(
            dimension_semantics=("parallel", "arbitrary")),
    )(adj_p, s1, be1, we2)

    # ---- stage 3: relu(adj @ s2 + be2) -> en3 -> sigmoid --------------------
    out_p = pl.pallas_call(
        _gcn2_tail_kernel,
        out_shape=jax.ShapeDtypeStruct((Np, Rp), f32),
        grid_spec=pltpu.PrefetchScalarGridSpec(
            num_scalar_prefetch=0,
            grid=(grid_m, grid_k),
            in_specs=[
                pl.BlockSpec((bm, bk), lambda i, k: (i, k)),   # adj tile
                pl.BlockSpec((bk, Rp), lambda i, k: (k, 0)),   # s2 tile
                const2((1, Rp)),                               # be2
                const2((Rp, Mp)), const2((1, Mp)),             # w31, b31
                const2((Mp, Rp)), const2((1, Rp)),             # w32, b32
            ],
            out_specs=pl.BlockSpec((bm, Rp), lambda i, k: (i, 0)),
            scratch_shapes=[pltpu.VMEM((bm, Rp), f32)],
        ),
        compiler_params=pltpu.CompilerParams(
            dimension_semantics=("parallel", "arbitrary")),
    )(adj_p, s2, be2, w31, b31, w32, b32)

    return out_p[:N, :rna_dim]


# ----------------------------------------------------------------------------
# Deterministic parameter init (kaiming-uniform-like).
# ----------------------------------------------------------------------------
def _init_linear(key, fan_in, fan_out, *, zero_bias=False):
    kw, kb = jax.random.split(key)
    bound = float(fan_in) ** -0.5
    w = jax.random.uniform(kw, (fan_in, fan_out), jnp.float32, -bound, bound)
    if zero_bias:
        b = jnp.zeros((1, fan_out), jnp.float32)
    else:
        b = jax.random.uniform(kb, (1, fan_out), jnp.float32, -bound, bound)
    return w, b


def make_params(key, rna_dim, gene_dim, mid_dim, second_dim):
    ks = jax.random.split(key, 8)
    p = {}
    p["wr1"], p["br1"] = _init_linear(ks[0], rna_dim, 2 * mid_dim)
    p["wr2"], p["br2"] = _init_linear(ks[1], 2 * mid_dim, mid_dim)
    p["wg1"], p["bg1"] = _init_linear(ks[2], gene_dim, 2 * mid_dim)
    p["wg2"], p["bg2"] = _init_linear(ks[3], 2 * mid_dim, mid_dim)
    p["we1"], p["be1"] = _init_linear(ks[4], 2 * mid_dim, second_dim, zero_bias=True)  # GCN en1
    p["we2"], p["be2"] = _init_linear(ks[5], second_dim, rna_dim, zero_bias=True)      # GCN en2
    p["w31"], p["b31"] = _init_linear(ks[6], rna_dim, mid_dim)
    p["w32"], p["b32"] = _init_linear(ks[7], mid_dim, rna_dim)
    return p


# ----------------------------------------------------------------------------
# Plain-JAX reference (same math, same bf16-operand / f32-accum matmul policy).
# ----------------------------------------------------------------------------
def g_forward_ref(rna, gene, adj, p):
    relu = lambda x: jnp.maximum(x, 0.0)
    h_r = relu(_mxu(rna, p["wr1"]) + p["br1"])
    h_r = relu(_mxu(h_r, p["wr2"]) + p["br2"])
    h_g = relu(_mxu(gene, p["wg1"]) + p["bg1"])
    h_g = relu(_mxu(h_g, p["wg2"]) + p["bg2"])
    data = jnp.concatenate([h_r, h_g], axis=-1)
    s1 = _mxu(data, p["we1"])
    d1 = relu(_mxu(adj, s1) + p["be1"])
    s2 = _mxu(d1, p["we2"])
    d2 = relu(_mxu(adj, s2) + p["be2"])
    h = relu(_mxu(d2, p["w31"]) + p["b31"])
    o = _mxu(h, p["w32"]) + p["b32"]
    return jax.nn.sigmoid(o)


if __name__ == "__main__":
    rna_dim, gene_dim, mid_dim, second_dim = 16, 32, 8, 8
    n_nodes = 600   # not a multiple of the tile -> exercises node-row padding

    key = jax.random.PRNGKey(0)
    k_rna, k_gene, k_adj, k_params = jax.random.split(key, 4)

    rna = jax.random.normal(k_rna, (n_nodes, rna_dim), jnp.float32)
    gene = jax.random.normal(k_gene, (n_nodes, gene_dim), jnp.float32)
    # symmetric, row-normalized-ish adjacency
    a = jax.random.uniform(k_adj, (n_nodes, n_nodes), jnp.float32)
    adj = (a + a.T) / (2.0 * n_nodes)

    params = make_params(k_params, rna_dim, gene_dim, mid_dim, second_dim)

    out = jax.block_until_ready(g_forward(rna, gene, adj, params, block=256))
    ref = g_forward_ref(rna, gene, adj, params)

    assert out.shape == (n_nodes, rna_dim)
    assert jnp.allclose(out, ref, atol=1e-3, rtol=1e-3), "mismatch vs reference"

    print("KERNEL_OK")
</pallas_src>

<mosaic_0001>
module attributes {stable_mosaic.version = 11 : i64} {
  func.func @_encoder_kernel(%arg0: i32, %arg1: memref<256x128xf32, #tpu.memory_space<vmem>>, %arg2: memref<256x128xf32, #tpu.memory_space<vmem>>, %arg3: memref<128x128xf32, #tpu.memory_space<vmem>>, %arg4: memref<1x128xf32, #tpu.memory_space<vmem>>, %arg5: memref<128x128xf32, #tpu.memory_space<vmem>>, %arg6: memref<1x128xf32, #tpu.memory_space<vmem>>, %arg7: memref<128x128xf32, #tpu.memory_space<vmem>>, %arg8: memref<1x128xf32, #tpu.memory_space<vmem>>, %arg9: memref<128x128xf32, #tpu.memory_space<vmem>>, %arg10: memref<1x128xf32, #tpu.memory_space<vmem>>, %arg11: memref<128x128xf32, #tpu.memory_space<vmem>>, %arg12: memref<128x128xf32, #tpu.memory_space<vmem>>, %arg13: memref<256x128xbf16, #tpu.memory_space<vmem>>) attributes {dimension_semantics = [#tpu.dimension_semantics<parallel>], iteration_bounds = array<i64: 3>, scalar_prefetch = 0 : i64, scratch_operands = 0 : i64, tpu.core_type = #tpu.core_type<tc>, window_params = [{transform_indices = @transform_0, window_bounds = array<i64: 256, 128>}, {transform_indices = @transform_1, window_bounds = array<i64: 256, 128>}, {pipeline_mode = #tpu.pipeline_mode<synchronous>, transform_indices = @transform_2, window_bounds = array<i64: 128, 128>}, {pipeline_mode = #tpu.pipeline_mode<synchronous>, transform_indices = @transform_3, window_bounds = array<i64: 1, 128>}, {pipeline_mode = #tpu.pipeline_mode<synchronous>, transform_indices = @transform_4, window_bounds = array<i64: 128, 128>}, {pipeline_mode = #tpu.pipeline_mode<synchronous>, transform_indices = @transform_5, window_bounds = array<i64: 1, 128>}, {pipeline_mode = #tpu.pipeline_mode<synchronous>, transform_indices = @transform_6, window_bounds = array<i64: 128, 128>}, {pipeline_mode = #tpu.pipeline_mode<synchronous>, transform_indices = @transform_7, window_bounds = array<i64: 1, 128>}, {pipeline_mode = #tpu.pipeline_mode<synchronous>, transform_indices = @transform_8, window_bounds = array<i64: 128, 128>}, {pipeline_mode = #tpu.pipeline_mode<synchronous>, transform_indices = @transform_9, window_bounds = array<i64: 1, 128>}, {pipeline_mode = #tpu.pipeline_mode<synchronous>, transform_indices = @transform_10, window_bounds = array<i64: 128, 128>}, {pipeline_mode = #tpu.pipeline_mode<synchronous>, transform_indices = @transform_11, window_bounds = array<i64: 128, 128>}, {transform_indices = @transform_12, window_bounds = array<i64: 256, 128>}]} {
    %c0 = arith.constant 0 : index
    %c0_0 = arith.constant 0 : index
    %0 = vector.load %arg1[%c0, %c0_0] : memref<256x128xf32, #tpu.memory_space<vmem>>, vector<256x128xf32>
    %c0_1 = arith.constant 0 : index
    %c0_2 = arith.constant 0 : index
    %1 = vector.load %arg3[%c0_1, %c0_2] : memref<128x128xf32, #tpu.memory_space<vmem>>, vector<128x128xf32>
    %2 = arith.truncf %0 : vector<256x128xf32> to vector<256x128xbf16>
    %3 = arith.truncf %1 : vector<128x128xf32> to vector<128x128xbf16>
    %cst = arith.constant dense<0.000000e+00> : vector<256x128xf32>
    %4 = tpu.matmul %2, %3, %cst {dimension_numbers = #tpu.dot_dimension_numbers<[1], [0], [0], [1], [0, 0, 1, 1], [], []>} : vector<256x128xbf16>, vector<128x128xbf16>, vector<256x128xf32> -> vector<256x128xf32>
    %c0_3 = arith.constant 0 : index
    %c0_4 = arith.constant 0 : index
    %5 = vector.load %arg4[%c0_3, %c0_4] : memref<1x128xf32, #tpu.memory_space<vmem>>, vector<1x128xf32>
    %6 = vector.broadcast %5 : vector<1x128xf32> to vector<256x128xf32>
    %7 = arith.addf %4, %6 : vector<256x128xf32>
    %cst_5 = arith.constant 0.000000e+00 : f32
    %8 = vector.broadcast %cst_5 : f32 to vector<256x128xf32>
    %9 = arith.maximumf %7, %8 : vector<256x128xf32>
    %c0_6 = arith.constant 0 : index
    %c0_7 = arith.constant 0 : index
    %10 = vector.load %arg5[%c0_6, %c0_7] : memref<128x128xf32, #tpu.memory_space<vmem>>, vector<128x128xf32>
    %11 = arith.truncf %9 : vector<256x128xf32> to vector<256x128xbf16>
    %12 = arith.truncf %10 : vector<128x128xf32> to vector<128x128xbf16>
    %cst_8 = arith.constant dense<0.000000e+00> : vector<256x128xf32>
    %13 = tpu.matmul %11, %12, %cst_8 {dimension_numbers = #tpu.dot_dimension_numbers<[1], [0], [0], [1], [0, 0, 1, 1], [], []>} : vector<256x128xbf16>, vector<128x128xbf16>, vector<256x128xf32> -> vector<256x128xf32>
    %c0_9 = arith.constant 0 : index
    %c0_10 = arith.constant 0 : index
    %14 = vector.load %arg6[%c0_9, %c0_10] : memref<1x128xf32, #tpu.memory_space<vmem>>, vector<1x128xf32>
    %15 = vector.broadcast %14 : vector<1x128xf32> to vector<256x128xf32>
    %16 = arith.addf %13, %15 : vector<256x128xf32>
    %cst_11 = arith.constant 0.000000e+00 : f32
    %17 = vector.broadcast %cst_11 : f32 to vector<256x128xf32>
    %18 = arith.maximumf %16, %17 : vector<256x128xf32>
    %c0_12 = arith.constant 0 : index
    %c0_13 = arith.constant 0 : index
    %19 = vector.load %arg2[%c0_12, %c0_13] : memref<256x128xf32, #tpu.memory_space<vmem>>, vector<256x128xf32>
    %c0_14 = arith.constant 0 : index
    %c0_15 = arith.constant 0 : index
    %20 = vector.load %arg7[%c0_14, %c0_15] : memref<128x128xf32, #tpu.memory_space<vmem>>, vector<128x128xf32>
    %21 = arith.truncf %19 : vector<256x128xf32> to vector<256x128xbf16>
    %22 = arith.truncf %20 : vector<128x128xf32> to vector<128x128xbf16>
    %cst_16 = arith.constant dense<0.000000e+00> : vector<256x128xf32>
    %23 = tpu.matmul %21, %22, %cst_16 {dimension_numbers = #tpu.dot_dimension_numbers<[1], [0], [0], [1], [0, 0, 1, 1], [], []>} : vector<256x128xbf16>, vector<128x128xbf16>, vector<256x128xf32> -> vector<256x128xf32>
    %c0_17 = arith.constant 0 : index
    %c0_18 = arith.constant 0 : index
    %24 = vector.load %arg8[%c0_17, %c0_18] : memref<1x128xf32, #tpu.memory_space<vmem>>, vector<1x128xf32>
    %25 = vector.broadcast %24 : vector<1x128xf32> to vector<256x128xf32>
    %26 = arith.addf %23, %25 : vector<256x128xf32>
    %cst_19 = arith.constant 0.000000e+00 : f32
    %27 = vector.broadcast %cst_19 : f32 to vector<256x128xf32>
    %28 = arith.maximumf %26, %27 : vector<256x128xf32>
    %c0_20 = arith.constant 0 : index
    %c0_21 = arith.constant 0 : index
    %29 = vector.load %arg9[%c0_20, %c0_21] : memref<128x128xf32, #tpu.memory_space<vmem>>, vector<128x128xf32>
    %30 = arith.truncf %28 : vector<256x128xf32> to vector<256x128xbf16>
    %31 = arith.truncf %29 : vector<128x128xf32> to vector<128x128xbf16>
    %cst_22 = arith.constant dense<0.000000e+00> : vector<256x128xf32>
    %32 = tpu.matmul %30, %31, %cst_22 {dimension_numbers = #tpu.dot_dimension_numbers<[1], [0], [0], [1], [0, 0, 1, 1], [], []>} : vector<256x128xbf16>, vector<128x128xbf16>, vector<256x128xf32> -> vector<256x128xf32>
    %c0_23 = arith.constant 0 : index
    %c0_24 = arith.constant 0 : index
    %33 = vector.load %arg10[%c0_23, %c0_24] : memref<1x128xf32, #tpu.memory_space<vmem>>, vector<1x128xf32>
    %34 = vector.broadcast %33 : vector<1x128xf32> to vector<256x128xf32>
    %35 = arith.addf %32, %34 : vector<256x128xf32>
    %cst_25 = arith.constant 0.000000e+00 : f32
    %36 = vector.broadcast %cst_25 : f32 to vector<256x128xf32>
    %37 = arith.maximumf %35, %36 : vector<256x128xf32>
    %c0_26 = arith.constant 0 : index
    %c0_27 = arith.constant 0 : index
    %38 = vector.load %arg11[%c0_26, %c0_27] : memref<128x128xf32, #tpu.memory_space<vmem>>, vector<128x128xf32>
    %39 = arith.truncf %18 : vector<256x128xf32> to vector<256x128xbf16>
    %40 = arith.truncf %38 : vector<128x128xf32> to vector<128x128xbf16>
    %cst_28 = arith.constant dense<0.000000e+00> : vector<256x128xf32>
    %41 = tpu.matmul %39, %40, %cst_28 {dimension_numbers = #tpu.dot_dimension_numbers<[1], [0], [0], [1], [0, 0, 1, 1], [], []>} : vector<256x128xbf16>, vector<128x128xbf16>, vector<256x128xf32> -> vector<256x128xf32>
    %c0_29 = arith.constant 0 : index
    %c0_30 = arith.constant 0 : index
    %42 = vector.load %arg12[%c0_29, %c0_30] : memref<128x128xf32, #tpu.memory_space<vmem>>, vector<128x128xf32>
    %43 = arith.truncf %37 : vector<256x128xf32> to vector<256x128xbf16>
    %44 = arith.truncf %42 : vector<128x128xf32> to vector<128x128xbf16>
    %cst_31 = arith.constant dense<0.000000e+00> : vector<256x128xf32>
    %45 = tpu.matmul %43, %44, %cst_31 {dimension_numbers = #tpu.dot_dimension_numbers<[1], [0], [0], [1], [0, 0, 1, 1], [], []>} : vector<256x128xbf16>, vector<128x128xbf16>, vector<256x128xf32> -> vector<256x128xf32>
    %46 = arith.addf %41, %45 : vector<256x128xf32>
    %47 = arith.truncf %46 : vector<256x128xf32> to vector<256x128xbf16>
    %c0_32 = arith.constant 0 : index
    %c0_33 = arith.constant 0 : index
    %48 = vector.load %arg13[%c0_32, %c0_33] : memref<256x128xbf16, #tpu.memory_space<vmem>>, vector<256x128xbf16>
    tpu.vector_store %arg13[%c0_32, %c0_33], %47 {strides = array<i32>} : memref<256x128xbf16, #tpu.memory_space<vmem>>, vector<256x128xbf16>,
    return
  }
  func.func @transform_0(%arg0: i32) -> (i32, i32) {
    %c0_i32 = arith.constant 0 : i32
    %c0_i32_0 = arith.constant 0 : i32
    return %arg0, %c0_i32 : i32, i32
  }
  func.func @transform_1(%arg0: i32) -> (i32, i32) {
    %c0_i32 = arith.constant 0 : i32
    %c0_i32_0 = arith.constant 0 : i32
    return %arg0, %c0_i32 : i32, i32
  }
  func.func @transform_2(%arg0: i32) -> (i32, i32) {
    %c0_i32 = arith.constant 0 : i32
    %c0_i32_0 = arith.constant 0 : i32
    %c0_i32_1 = arith.constant 0 : i32
    return %c0_i32, %c0_i32_0 : i32, i32
  }
  func.func @transform_3(%arg0: i32) -> (i32, i32) {
    %c0_i32 = arith.constant 0 : i32
    %c0_i32_0 = arith.constant 0 : i32
    %c0_i32_1 = arith.constant 0 : i32
    return %c0_i32, %c0_i32_0 : i32, i32
  }
  func.func @transform_4(%arg0: i32) -> (i32, i32) {
    %c0_i32 = arith.constant 0 : i32
    %c0_i32_0 = arith.constant 0 : i32
    %c0_i32_1 = arith.constant 0 : i32
    return %c0_i32, %c0_i32_0 : i32, i32
  }
  func.func @transform_5(%arg0: i32) -> (i32, i32) {
    %c0_i32 = arith.constant 0 : i32
    %c0_i32_0 = arith.constant 0 : i32
    %c0_i32_1 = arith.constant 0 : i32
    return %c0_i32, %c0_i32_0 : i32, i32
  }
  func.func @transform_6(%arg0: i32) -> (i32, i32) {
    %c0_i32 = arith.constant 0 : i32
    %c0_i32_0 = arith.constant 0 : i32
    %c0_i32_1 = arith.constant 0 : i32
    return %c0_i32, %c0_i32_0 : i32, i32
  }
  func.func @transform_7(%arg0: i32) -> (i32, i32) {
    %c0_i32 = arith.constant 0 : i32
    %c0_i32_0 = arith.constant 0 : i32
    %c0_i32_1 = arith.constant 0 : i32
    return %c0_i32, %c0_i32_0 : i32, i32
  }
  func.func @transform_8(%arg0: i32) -> (i32, i32) {
    %c0_i32 = arith.constant 0 : i32
    %c0_i32_0 = arith.constant 0 : i32
    %c0_i32_1 = arith.constant 0 : i32
    return %c0_i32, %c0_i32_0 : i32, i32
  }
  func.func @transform_9(%arg0: i32) -> (i32, i32) {
    %c0_i32 = arith.constant 0 : i32
    %c0_i32_0 = arith.constant 0 : i32
    %c0_i32_1 = arith.constant 0 : i32
    return %c0_i32, %c0_i32_0 : i32, i32
  }
  func.func @transform_10(%arg0: i32) -> (i32, i32) {
    %c0_i32 = arith.constant 0 : i32
    %c0_i32_0 = arith.constant 0 : i32
    %c0_i32_1 = arith.constant 0 : i32
    return %c0_i32, %c0_i32_0 : i32, i32
  }
  func.func @transform_11(%arg0: i32) -> (i32, i32) {
    %c0_i32 = arith.constant 0 : i32
    %c0_i32_0 = arith.constant 0 : i32
    %c0_i32_1 = arith.constant 0 : i32
    return %c0_i32, %c0_i32_0 : i32, i32
  }
  func.func @transform_12(%arg0: i32) -> (i32, i32) {
    %c0_i32 = arith.constant 0 : i32
    %c0_i32_0 = arith.constant 0 : i32
    return %arg0, %c0_i32 : i32, i32
  }
}

</mosaic_0001>

<llo_original>
// kernel: tpu_custom_call.1
$region0: #{tpu_custom_call.1}
  #allocation0 [shape = 'u32[]', space=smem, size = 0x4, offset = 0x4, fixed_abs, tag = 'smem constant byte address 0x4 - core index']
  #allocation1 [shape = 'u32[144,128]{1,0:T(1,128)}', space=vmem, size = 0x12000, scoped, tag = 'internal scratch']
  %s0 = inlined_call_operand.hbm [shape: f32[768,128], index: 0, kind: input, shape index: {}]
  %s1 = inlined_call_operand.hbm [shape: f32[768,128], index: 1, kind: input, shape index: {}]
  %s2 = inlined_call_operand.hbm [shape: f32[128,128], index: 2, kind: input, shape index: {}]
  %s3 = inlined_call_operand.vmem [shape: f32[1,128], index: 3, kind: input, shape index: {}]
  %s4 = inlined_call_operand.hbm [shape: f32[128,128], index: 4, kind: input, shape index: {}]
  %s5 = inlined_call_operand.vmem [shape: f32[1,128], index: 5, kind: input, shape index: {}]
  %s6 = inlined_call_operand.hbm [shape: f32[128,128], index: 6, kind: input, shape index: {}]
  %s7 = inlined_call_operand.vmem [shape: f32[1,128], index: 7, kind: input, shape index: {}]
  %s8 = inlined_call_operand.hbm [shape: f32[128,128], index: 8, kind: input, shape index: {}]
  %s9 = inlined_call_operand.vmem [shape: f32[1,128], index: 9, kind: input, shape index: {}]
  %s10 = inlined_call_operand.hbm [shape: f32[128,128], index: 10, kind: input, shape index: {}]
  %s11 = inlined_call_operand.hbm [shape: f32[128,128], index: 11, kind: input, shape index: {}]
  %s12 = inlined_call_operand.hbm [shape: bf16[768,128], index: 12, kind: output, shape index: {}]
  %s13 = sld [smem:[#allocation0]]
  $region113: #{tpu_custom_call.1} parent=0
    _
  %s15 = ssub.s32 1, %s13
  %s16 = scalar_select 0, %s15, %s13
  $region1: #{tpu_custom_call.1} parent=0
    #allocation2 [shape = 'u8[262144]{0}', space=vmem, size = 0x40000, scoped, tag = 'input window, operand 0']
    #allocation3 [shape = 's32[2]{0}', space=sflag, size = 0x8, scoped, tag = 'scoped memory for tpu_custom_call.1']
    #allocation4 [shape = 's32[2]{0}', space=sflag, size = 0x8, scoped, tag = 'scoped memory for tpu_custom_call.1']
    #allocation5 [shape = 'u8[262144]{0}', space=vmem, size = 0x40000, scoped, tag = 'input window, operand 1']
    #allocation6 [shape = 's32[2]{0}', space=sflag, size = 0x8, scoped, tag = 'scoped memory for tpu_custom_call.1']
    #allocation7 [shape = 'u8[65536]{0}', space=vmem, size = 0x10000, scoped, tag = 'input window, operand 2, single buffered']
    #allocation8 [shape = 'u8[65536]{0}', space=vmem, size = 0x10000, scoped, tag = 'input window, operand 4, single buffered']
    #allocation9 [shape = 's32[1]{0}', space=sflag, size = 0x4, scoped, tag = 'scoped memory for tpu_custom_call.1']
    #allocation10 [shape = 'u8[65536]{0}', space=vmem, size = 0x10000, scoped, tag = 'input window, operand 6, single buffered']
    #allocation11 [shape = 'u8[65536]{0}', space=vmem, size = 0x10000, scoped, tag = 'input window, operand 8, single buffered']
    #allocation12 [shape = 's32[1]{0}', space=sflag, size = 0x4, scoped, tag = 'scoped memory for tpu_custom_call.1']
    #allocation13 [shape = 'u8[65536]{0}', space=vmem, size = 0x10000, scoped, tag = 'input window, operand 10, single buffered']
    #allocation14 [shape = 'u8[65536]{0}', space=vmem, size = 0x10000, scoped, tag = 'input window, operand 11, single buffered']
    #allocation15 [shape = 's32[1]{0}', space=sflag, size = 0x4, scoped, tag = 'scoped memory for tpu_custom_call.1']
    #allocation16 [shape = 'u8[131072]{0}', space=vmem, size = 0x20000, scoped, tag = 'output window, operand 0']
    %17 = vsyncpa [#allocation3], 0
    %s18 = scalar_lea.sflag [#allocation3], 1
    %19 = vsyncpa %s18, 0
    %20 = vsyncpa [#allocation6], 0
    %s21 = scalar_lea.sflag [#allocation6], 1
    %22 = vsyncpa %s21, 0
    %23 = vsyncpa [#allocation9], 0
    %24 = vsyncpa [#allocation12], 0
    %25 = vsyncpa [#allocation15], 0
    %26 = vsyncpa [#allocation4], 0
    %s27 = scalar_lea.sflag [#allocation4], 1
    %28 = vsyncpa %s27, 0
    loop: start=0, step=1, limit=5
    $region2: #{tpu_custom_call.1} parent=1 // loop_pre_header
      _
    $region3: #{tpu_custom_call.1} parent=1 // loop_header
      %s30 = sphi 0, %s34
      %p31 = scmp.ge.s32.totalorder %s30, 5
      %s40 = sphi 0, %s42
      %s43 = sphi 0, %s40
      %s44 = sphi 0, %s43
      %s60 = sphi 0, %s44
      %s66 = sphi 0, %s68
      %s69 = sphi 0, %s66
      %s70 = sphi 0, %s69
      %s86 = sphi 0, %s70
      %s90 = sphi 0, %s90
      %s92 = sphi 0, %s90
      %s93 = sphi 0, %s92
      %s107 = sphi 0, %s93
      %s111 = sphi 0, %s111
      %s113 = sphi 0, %s111
      %s114 = sphi 0, %s113
      %s128 = sphi 0, %s114
      %s132 = sphi 0, %s132
      %s134 = sphi 0, %s132
      %s135 = sphi 0, %s134
      %s149 = sphi 0, %s135
      %s153 = sphi 0, %s153
      %s155 = sphi 0, %s153
      %s156 = sphi 0, %s155
      %s170 = sphi 0, %s156
      %s174 = sphi 0, %s174
      %s176 = sphi 0, %s174
      %s177 = sphi 0, %s176
      %s191 = sphi 0, %s177
      %s195 = sphi 0, %s195
      %s197 = sphi 0, %s195
      %s198 = sphi 0, %s197
      %s212 = sphi 0, %s198
      %s216 = sphi 0, %s216
      %s218 = sphi 0, %s216
      %s219 = sphi 0, %s218
      %s233 = sphi 0, %s219
      %s237 = sphi 0, %s237
      %s239 = sphi 0, %s237
      %s240 = sphi 0, %s239
      %s254 = sphi 0, %s240
      %s258 = sphi 0, %s258
      %s260 = sphi 0, %s258
      %s261 = sphi 0, %s260
      %s275 = sphi 0, %s261
      %s279 = sphi 0, %s279
      %s281 = sphi 0, %s279
      %s282 = sphi 0, %s281
      %s296 = sphi 0, %s282
      %s302 = sphi 0, %s304
      %s305 = sphi 0, %s302
      %s306 = sphi 0, %s305
      %s322 = sphi 0, %s306
    $region4: #{tpu_custom_call.1} parent=1 // loop_header_branch
      %33 = sbr.rel (%p31) target = $region8
    $region5: #{tpu_custom_call.1} parent=1 // loop_body
      %s35 = ssub.s32 %s30, 1
      %s36 = ssub.s32 %s30, 2
      %s37 = sadd.s32 %s30, 1
      %s38 = ssub.s32 %s30, %s37
      %p39 = scmp.eq.s32.totalorder %s38, 0
      %s41 = sadd.s32 %s40, 1
      %s42 = scalar_select %p39, %s40, %s41
      %p45 = pneg %p39
      %p46 = scmp.eq.s32.totalorder %s30, 2
      %p47 = por %p45, %p46
      %p48 = scmp.ne.s32.totalorder %s40, %s43
      %p49 = scmp.eq.s32.totalorder %s30, 0
      %p50 = por %p48, %p49
      %p51 = scmp.ne.s32.totalorder %s40, %s43
      %p52 = scmp.eq.s32.totalorder %s35, 2
      %p53 = por %p51, %p52
      %p54 = scmp.ne.s32.totalorder %s43, %s44
      %p55 = scmp.eq.s32.totalorder %s35, 0
      %p56 = por %p54, %p55
      %p57 = scmp.ne.s32.totalorder %s43, %s44
      %p58 = scmp.eq.s32.totalorder %s36, 2
      %p59 = por %p57, %p58
      %p61 = scmp.ne.s32.totalorder %s44, %s60
      %p62 = scmp.eq.s32.totalorder %s36, 0
      %p63 = por %p61, %p62
      %s64 = ssub.s32 %s30, %s37
      %p65 = scmp.eq.s32.totalorder %s64, 0
      %s67 = sadd.s32 %s66, 1
      %s68 = scalar_select %p65, %s66, %s67
      %p71 = pneg %p65
      %p72 = scmp.eq.s32.totalorder %s30, 2
      %p73 = por %p71, %p72
      %p74 = scmp.ne.s32.totalorder %s66, %s69
      %p75 = scmp.eq.s32.totalorder %s30, 0
      %p76 = por %p74, %p75
      %p77 = scmp.ne.s32.totalorder %s66, %s69
      %p78 = scmp.eq.s32.totalorder %s35, 2
      %p79 = por %p77, %p78
      %p80 = scmp.ne.s32.totalorder %s69, %s70
      %p81 = scmp.eq.s32.totalorder %s35, 0
      %p82 = por %p80, %p81
      %p83 = scmp.ne.s32.totalorder %s69, %s70
      %p84 = scmp.eq.s32.totalorder %s36, 2
      %p85 = por %p83, %p84
      %p87 = scmp.ne.s32.totalorder %s70, %s86
      %p88 = scmp.eq.s32.totalorder %s36, 0
      %p89 = por %p87, %p88
      %s91 = sadd.s32 %s90, 1
      %p94 = scmp.eq.s32.totalorder %s30, 2
      %p95 = scmp.ne.s32.totalorder %s90, %s92
      %p96 = scmp.eq.s32.totalorder %s30, 0
      %p97 = por %p95, %p96
      %p98 = scmp.ne.s32.totalorder %s90, %s92
      %p99 = scmp.eq.s32.totalorder %s35, 2
      %p100 = por %p98, %p99
      %p101 = scmp.ne.s32.totalorder %s92, %s93
      %p102 = scmp.eq.s32.totalorder %s35, 0
      %p103 = por %p101, %p102
      %p104 = scmp.ne.s32.totalorder %s92, %s93
      %p105 = scmp.eq.s32.totalorder %s36, 2
      %p106 = por %p104, %p105
      %p108 = scmp.ne.s32.totalorder %s93, %s107
      %p109 = scmp.eq.s32.totalorder %s36, 0
      %p110 = por %p108, %p109
      %s112 = sadd.s32 %s111, 1
      %p115 = scmp.eq.s32.totalorder %s30, 2
      %p116 = scmp.ne.s32.totalorder %s111, %s113
      %p117 = scmp.eq.s32.totalorder %s30, 0
      %p118 = por %p116, %p117
      %p119 = scmp.ne.s32.totalorder %s111, %s113
      %p120 = scmp.eq.s32.totalorder %s35, 2
      %p121 = por %p119, %p120
      %p122 = scmp.ne.s32.totalorder %s113, %s114
      %p123 = scmp.eq.s32.totalorder %s35, 0
      %p124 = por %p122, %p123
      %p125 = scmp.ne.s32.totalorder %s113, %s114
      %p126 = scmp.eq.s32.totalorder %s36, 2
      %p127 = por %p125, %p126
      %p129 = scmp.ne.s32.totalorder %s114, %s128
      %p130 = scmp.eq.s32.totalorder %s36, 0
      %p131 = por %p129, %p130
      %s133 = sadd.s32 %s132, 1
      %p136 = scmp.eq.s32.totalorder %s30, 2
      %p137 = scmp.ne.s32.totalorder %s132, %s134
      %p138 = scmp.eq.s32.totalorder %s30, 0
      %p139 = por %p137, %p138
      %p140 = scmp.ne.s32.totalorder %s132, %s134
      %p141 = scmp.eq.s32.totalorder %s35, 2
      %p142 = por %p140, %p141
      %p143 = scmp.ne.s32.totalorder %s134, %s135
      %p144 = scmp.eq.s32.totalorder %s35, 0
      %p145 = por %p143, %p144
      %p146 = scmp.ne.s32.totalorder %s134, %s135
      %p147 = scmp.eq.s32.totalorder %s36, 2
      %p148 = por %p146, %p147
      %p150 = scmp.ne.s32.totalorder %s135, %s149
      %p151 = scmp.eq.s32.totalorder %s36, 0
      %p152 = por %p150, %p151
      %s154 = sadd.s32 %s153, 1
      %p157 = scmp.eq.s32.totalorder %s30, 2
      %p158 = scmp.ne.s32.totalorder %s153, %s155
      %p159 = scmp.eq.s32.totalorder %s30, 0
      %p160 = por %p158, %p159
      %p161 = scmp.ne.s32.totalorder %s153, %s155
      %p162 = scmp.eq.s32.totalorder %s35, 2
      %p163 = por %p161, %p162
      %p164 = scmp.ne.s32.totalorder %s155, %s156
      %p165 = scmp.eq.s32.totalorder %s35, 0
      %p166 = por %p164, %p165
      %p167 = scmp.ne.s32.totalorder %s155, %s156
      %p168 = scmp.eq.s32.totalorder %s36, 2
      %p169 = por %p167, %p168
      %p171 = scmp.ne.s32.totalorder %s156, %s170
      %p172 = scmp.eq.s32.totalorder %s36, 0
      %p173 = por %p171, %p172
      %s175 = sadd.s32 %s174, 1
      %p178 = scmp.eq.s32.totalorder %s30, 2
      %p179 = scmp.ne.s32.totalorder %s174, %s176
      %p180 = scmp.eq.s32.totalorder %s30, 0
      %p181 = por %p179, %p180
      %p182 = scmp.ne.s32.totalorder %s174, %s176
      %p183 = scmp.eq.s32.totalorder %s35, 2
      %p184 = por %p182, %p183
      %p185 = scmp.ne.s32.totalorder %s176, %s177
      %p186 = scmp.eq.s32.totalorder %s35, 0
      %p187 = por %p185, %p186
      %p188 = scmp.ne.s32.totalorder %s176, %s177
      %p189 = scmp.eq.s32.totalorder %s36, 2
      %p190 = por %p188, %p189
      %p192 = scmp.ne.s32.totalorder %s177, %s191
      %p193 = scmp.eq.s32.totalorder %s36, 0
      %p194 = por %p192, %p193
      %s196 = sadd.s32 %s195, 1
      %p199 = scmp.eq.s32.totalorder %s30, 2
      %p200 = scmp.ne.s32.totalorder %s195, %s197
      %p201 = scmp.eq.s32.totalorder %s30, 0
      %p202 = por %p200, %p201
      %p203 = scmp.ne.s32.totalorder %s195, %s197
      %p204 = scmp.eq.s32.totalorder %s35, 2
      %p205 = por %p203, %p204
      %p206 = scmp.ne.s32.totalorder %s197, %s198
      %p207 = scmp.eq.s32.totalorder %s35, 0
      %p208 = por %p206, %p207
      %p209 = scmp.ne.s32.totalorder %s197, %s198
      %p210 = scmp.eq.s32.totalorder %s36, 2
      %p211 = por %p209, %p210
      %p213 = scmp.ne.s32.totalorder %s198, %s212
      %p214 = scmp.eq.s32.totalorder %s36, 0
      %p215 = por %p213, %p214
      %s217 = sadd.s32 %s216, 1
      %p220 = scmp.eq.s32.totalorder %s30, 2
      %p221 = scmp.ne.s32.totalorder %s216, %s218
      %p222 = scmp.eq.s32.totalorder %s30, 0
      %p223 = por %p221, %p222
      %p224 = scmp.ne.s32.totalorder %s216, %s218
      %p225 = scmp.eq.s32.totalorder %s35, 2
      %p226 = por %p224, %p225
      %p227 = scmp.ne.s32.totalorder %s218, %s219
      %p228 = scmp.eq.s32.totalorder %s35, 0
      %p229 = por %p227, %p228
      %p230 = scmp.ne.s32.totalorder %s218, %s219
      %p231 = scmp.eq.s32.totalorder %s36, 2
      %p232 = por %p230, %p231
      %p234 = scmp.ne.s32.totalorder %s219, %s233
      %p235 = scmp.eq.s32.totalorder %s36, 0
      %p236 = por %p234, %p235
      %s238 = sadd.s32 %s237, 1
      %p241 = scmp.eq.s32.totalorder %s30, 2
      %p242 = scmp.ne.s32.totalorder %s237, %s239
      %p243 = scmp.eq.s32.totalorder %s30, 0
      %p244 = por %p242, %p243
      %p245 = scmp.ne.s32.totalorder %s237, %s239
      %p246 = scmp.eq.s32.totalorder %s35, 2
      %p247 = por %p245, %p246
      %p248 = scmp.ne.s32.totalorder %s239, %s240
      %p249 = scmp.eq.s32.totalorder %s35, 0
      %p250 = por %p248, %p249
      %p251 = scmp.ne.s32.totalorder %s239, %s240
      %p252 = scmp.eq.s32.totalorder %s36, 2
      %p253 = por %p251, %p252
      %p255 = scmp.ne.s32.totalorder %s240, %s254
      %p256 = scmp.eq.s32.totalorder %s36, 0
      %p257 = por %p255, %p256
      %s259 = sadd.s32 %s258, 1
      %p262 = scmp.eq.s32.totalorder %s30, 2
      %p263 = scmp.ne.s32.totalorder %s258, %s260
      %p264 = scmp.eq.s32.totalorder %s30, 0
      %p265 = por %p263, %p264
      %p266 = scmp.ne.s32.totalorder %s258, %s260
      %p267 = scmp.eq.s32.totalorder %s35, 2
      %p268 = por %p266, %p267
      %p269 = scmp.ne.s32.totalorder %s260, %s261
      %p270 = scmp.eq.s32.totalorder %s35, 0
      %p271 = por %p269, %p270
      %p272 = scmp.ne.s32.totalorder %s260, %s261
      %p273 = scmp.eq.s32.totalorder %s36, 2
      %p274 = por %p272, %p273
      %p276 = scmp.ne.s32.totalorder %s261, %s275
      %p277 = scmp.eq.s32.totalorder %s36, 0
      %p278 = por %p276, %p277
      %s280 = sadd.s32 %s279, 1
      %p283 = scmp.eq.s32.totalorder %s30, 2
      %p284 = scmp.ne.s32.totalorder %s279, %s281
      %p285 = scmp.eq.s32.totalorder %s30, 0
      %p286 = por %p284, %p285
      %p287 = scmp.ne.s32.totalorder %s279, %s281
      %p288 = scmp.eq.s32.totalorder %s35, 2
      %p289 = por %p287, %p288
      %p290 = scmp.ne.s32.totalorder %s281, %s282
      %p291 = scmp.eq.s32.totalorder %s35, 0
      %p292 = por %p290, %p291
      %p293 = scmp.ne.s32.totalorder %s281, %s282
      %p294 = scmp.eq.s32.totalorder %s36, 2
      %p295 = por %p293, %p294
      %p297 = scmp.ne.s32.totalorder %s282, %s296
      %p298 = scmp.eq.s32.totalorder %s36, 0
      %p299 = por %p297, %p298
      %s300 = ssub.s32 %s30, %s37
      %p301 = scmp.eq.s32.totalorder %s300, 0
      %s303 = sadd.s32 %s302, 1
      %s304 = scalar_select %p301, %s302, %s303
      %p307 = pneg %p301
      %p308 = scmp.eq.s32.totalorder %s30, 2
      %p309 = por %p307, %p308
      %p310 = scmp.ne.s32.totalorder %s302, %s305
      %p311 = scmp.eq.s32.totalorder %s30, 0
      %p312 = por %p310, %p311
      %p313 = scmp.ne.s32.totalorder %s302, %s305
      %p314 = scmp.eq.s32.totalorder %s35, 2
      %p315 = por %p313, %p314
      %p316 = scmp.ne.s32.totalorder %s305, %s306
      %p317 = scmp.eq.s32.totalorder %s35, 0
      %p318 = por %p316, %p317
      %p319 = scmp.ne.s32.totalorder %s305, %s306
      %p320 = scmp.eq.s32.totalorder %s36, 2
      %p321 = por %p319, %p320
      %p323 = scmp.ne.s32.totalorder %s306, %s322
      %p324 = scmp.eq.s32.totalorder %s36, 0
      %p325 = por %p323, %p324
      %p326 = scmp.le.s32.totalorder 1, %s30
      %p327 = scmp.lt.s32.totalorder %s30, 4
      %p328 = pnand %p326, %p327
      %p329 = pneg %p328
      // Predicated region
      $region9: #{tpu_custom_call.1} parent=5 // pred_check
        _
      $region10: #{tpu_custom_call.1} parent=5 // pred_check_branch
        %331 = sbr.rel (%p328) target = $region12
      $region11: #{tpu_custom_call.1} parent=5 // pred_region
        %s332 = ssub.s32 %s30, 1
        // Predicated region
        $region13: #{tpu_custom_call.1} parent=11 // pred_check
          %p333 = pneg %p103
        $region14: #{tpu_custom_call.1} parent=11 // pred_check_branch
          %335 = sbr.rel (%p333) target = $region16
        $region15: #{tpu_custom_call.1} parent=11 // pred_region
          %s337 = ssub.s32 2048, 2048
          %338 = vsyncadd [#allocation6], %s337
          %s339 = sshll.u32 [#allocation7], 4
          %s340 = int_to_ptr.vmem [resolvable:$true] %s339
          %345 = dma.hbm_to_vmem [thread:$0]  %s2, 2048, %s340, [#allocation6], 128, 128, 8
        $region16: #{tpu_custom_call.1} parent=11 // pred_fallthru
          _
        // Predicated region
        $region17: #{tpu_custom_call.1} parent=11 // pred_check
          %p346 = pneg %p124
        $region18: #{tpu_custom_call.1} parent=11 // pred_check_branch
          %348 = sbr.rel (%p346) target = $region20
        $region19: #{tpu_custom_call.1} parent=11 // pred_region
          _
        $region20: #{tpu_custom_call.1} parent=11 // pred_fallthru
          _
        // Predicated region
        $region21: #{tpu_custom_call.1} parent=11 // pred_check
          %p349 = pneg %p145
        $region22: #{tpu_custom_call.1} parent=11 // pred_check_branch
          %351 = sbr.rel (%p349) target = $region24
        $region23: #{tpu_custom_call.1} parent=11 // pred_region
          %s353 = ssub.s32 2048, 2048
          %354 = vsyncadd [#allocation9], %s353
          %s355 = sshll.u32 [#allocation8], 4
          %s356 = int_to_ptr.vmem [resolvable:$true] %s355
          %361 = dma.hbm_to_vmem [thread:$0]  %s4, 2048, %s356, [#allocation9], 128, 128, 8
        $region24: #{tpu_custom_call.1} parent=11 // pred_fallthru
          _
        // Predicated region
        $region25: #{tpu_custom_call.1} parent=11 // pred_check
          %p362 = pneg %p166
        $region26: #{tpu_custom_call.1} parent=11 // pred_check_branch
          %364 = sbr.rel (%p362) target = $region28
        $region27: #{tpu_custom_call.1} parent=11 // pred_region
          _
        $region28: #{tpu_custom_call.1} parent=11 // pred_fallthru
          _
        // Predicated region
        $region29: #{tpu_custom_call.1} parent=11 // pred_check
          %p365 = pneg %p187
        $region30: #{tpu_custom_call.1} parent=11 // pred_check_branch
          %367 = sbr.rel (%p365) target = $region32
        $region31: #{tpu_custom_call.1} parent=11 // pred_region
          %s369 = ssub.s32 2048, 2048
          %370 = vsyncadd [#allocation9], %s369
          %s371 = sshll.u32 [#allocation10], 4
          %s372 = int_to_ptr.vmem [resolvable:$true] %s371
          %377 = dma.hbm_to_vmem [thread:$0]  %s6, 2048, %s372, [#allocation9], 128, 128, 8
        $region32: #{tpu_custom_call.1} parent=11 // pred_fallthru
          _
        // Predicated region
        $region33: #{tpu_custom_call.1} parent=11 // pred_check
          %p378 = pneg %p208
        $region34: #{tpu_custom_call.1} parent=11 // pred_check_branch
          %380 = sbr.rel (%p378) target = $region36
        $region35: #{tpu_custom_call.1} parent=11 // pred_region
          _
        $region36: #{tpu_custom_call.1} parent=11 // pred_fallthru
          _
        // Predicated region
        $region37: #{tpu_custom_call.1} parent=11 // pred_check
          %p381 = pneg %p229
        $region38: #{tpu_custom_call.1} parent=11 // pred_check_branch
          %383 = sbr.rel (%p381) target = $region40
        $region39: #{tpu_custom_call.1} parent=11 // pred_region
          %s385 = ssub.s32 2048, 2048
          %386 = vsyncadd [#allocation12], %s385
          %s387 = sshll.u32 [#allocation11], 4
          %s388 = int_to_ptr.vmem [resolvable:$true] %s387
          %393 = dma.hbm_to_vmem [thread:$0]  %s8, 2048, %s388, [#allocation12], 128, 128, 8
        $region40: #{tpu_custom_call.1} parent=11 // pred_fallthru
          _
        // Predicated region
        $region41: #{tpu_custom_call.1} parent=11 // pred_check
          %p394 = pneg %p250
        $region42: #{tpu_custom_call.1} parent=11 // pred_check_branch
          %396 = sbr.rel (%p394) target = $region44
        $region43: #{tpu_custom_call.1} parent=11 // pred_region
          _
        $region44: #{tpu_custom_call.1} parent=11 // pred_fallthru
          _
        // Predicated region
        $region45: #{tpu_custom_call.1} parent=11 // pred_check
          %p397 = pneg %p271
        $region46: #{tpu_custom_call.1} parent=11 // pred_check_branch
          %399 = sbr.rel (%p397) target = $region48
        $region47: #{tpu_custom_call.1} parent=11 // pred_region
          %s401 = ssub.s32 2048, 2048
          %402 = vsyncadd [#allocation12], %s401
          %s403 = sshll.u32 [#allocation13], 4
          %s404 = int_to_ptr.vmem [resolvable:$true] %s403
          %409 = dma.hbm_to_vmem [thread:$0]  %s10, 2048, %s404, [#allocation12], 128, 128, 8
        $region48: #{tpu_custom_call.1} parent=11 // pred_fallthru
          _
        // Predicated region
        $region49: #{tpu_custom_call.1} parent=11 // pred_check
          %p410 = pneg %p292
        $region50: #{tpu_custom_call.1} parent=11 // pred_check_branch
          %412 = sbr.rel (%p410) target = $region52
        $region51: #{tpu_custom_call.1} parent=11 // pred_region
          %s414 = ssub.s32 2048, 2048
          %415 = vsyncadd [#allocation15], %s414
          %s416 = sshll.u32 [#allocation14], 4
          %s417 = int_to_ptr.vmem [resolvable:$true] %s416
          %422 = dma.hbm_to_vmem [thread:$0]  %s11, 2048, %s417, [#allocation15], 128, 128, 8
        $region52: #{tpu_custom_call.1} parent=11 // pred_fallthru
          _
      $region12: #{tpu_custom_call.1} parent=5 // pred_fallthru
        _
      %p423 = scmp.lt.s32.totalorder %s30, 3
      // Predicated region
      $region53: #{tpu_custom_call.1} parent=5 // pred_check
        %p424 = pneg %p423
      $region54: #{tpu_custom_call.1} parent=5 // pred_check_branch
        %426 = sbr.rel (%p424) target = $region56
      $region55: #{tpu_custom_call.1} parent=5 // pred_region
        // Predicated region
        $region57: #{tpu_custom_call.1} parent=55 // pred_check
          %p427 = pneg %p50
        $region58: #{tpu_custom_call.1} parent=55 // pred_check_branch
          %429 = sbr.rel (%p427) target = $region60
        $region59: #{tpu_custom_call.1} parent=55 // pred_region
          %s430 = sand.u32 %s40, 1
          %s431 = scalar_lea.sflag [#allocation3], %s430
          %s432 = sand.u32 %s40, 1
          %s433 = smul.addr %s432, 256
          %s434 = scalar_lea.vmem [#allocation2], %s433
          %s435 = smul.u32 32, %s30
          %s437 = ssub.s32 4096, 4096
          %438 = vsyncadd %s431, %s437
          %s439 = smul.addr %s435, 128
          %s440 = scalar_lea.hbm %s0, %s439
          %s441 = sshll.u32 %s434, 4
          %s442 = int_to_ptr.vmem [resolvable:$true] %s441
          %447 = dma.hbm_to_vmem [thread:$0]  %s440, 4096, %s442, %s431, 128, 128, 8
        $region60: #{tpu_custom_call.1} parent=55 // pred_fallthru
          _
        // Predicated region
        $region61: #{tpu_custom_call.1} parent=55 // pred_check
          %p448 = pneg %p76
        $region62: #{tpu_custom_call.1} parent=55 // pred_check_branch
          %450 = sbr.rel (%p448) target = $region64
        $region63: #{tpu_custom_call.1} parent=55 // pred_region
          %s451 = sand.u32 %s30, 1
          %s452 = scalar_lea.sflag [#allocation6], %s451
          %s453 = sand.u32 %s66, 1
          %s454 = smul.addr %s453, 256
          %s455 = scalar_lea.vmem [#allocation5], %s454
          %s456 = smul.u32 32, %s30
          %s458 = ssub.s32 4096, 4096
          %459 = vsyncadd %s452, %s458
          %s460 = smul.addr %s456, 128
          %s461 = scalar_lea.hbm %s1, %s460
          %s462 = sshll.u32 %s455, 4
          %s463 = int_to_ptr.vmem [resolvable:$true] %s462
          %468 = dma.hbm_to_vmem [thread:$0]  %s461, 4096, %s463, %s452, 128, 128, 8
        $region64: #{tpu_custom_call.1} parent=55 // pred_fallthru
          _
      $region56: #{tpu_custom_call.1} parent=5 // pred_fallthru
        _
      %p469 = scmp.le.s32.totalorder 1, %s30
      %p470 = scmp.lt.s32.totalorder %s30, 4
      %p471 = pnand %p469, %p470
      %p472 = pneg %p471
      // Predicated region
      $region65: #{tpu_custom_call.1} parent=5 // pred_check
        _
      $region66: #{tpu_custom_call.1} parent=5 // pred_check_branch
        %474 = sbr.rel (%p471) target = $region68
      $region67: #{tpu_custom_call.1} parent=5 // pred_region
        %s475 = ssub.s32 %s30, 1
        %s476 = sand.u32 %s43, 1
        %s477 = scalar_lea.sflag [#allocation3], %s476
        %s478 = sand.u32 %s43, 1
        %s479 = smul.addr %s478, 256
        %s480 = scalar_lea.vmem [#allocation2], %s479
        // Predicated region
        $region69: #{tpu_custom_call.1} parent=67 // pred_check
          %p481 = pneg %p56
        $region70: #{tpu_custom_call.1} parent=67 // pred_check_branch
          %483 = sbr.rel (%p481) target = $region72
        $region71: #{tpu_custom_call.1} parent=67 // pred_region
          %484 = dma.done %s477, 4096
        $region72: #{tpu_custom_call.1} parent=67 // pred_fallthru
          _
        %s485 = sand.u32 %s35, 1
        %s486 = scalar_lea.sflag [#allocation6], %s485
        %s487 = sand.u32 %s69, 1
        %s488 = smul.addr %s487, 256
        %s489 = scalar_lea.vmem [#allocation5], %s488
        // Predicated region
        $region73: #{tpu_custom_call.1} parent=67 // pred_check
          %p490 = pneg %p82
        $region74: #{tpu_custom_call.1} parent=67 // pred_check_branch
          %492 = sbr.rel (%p490) target = $region76
        $region75: #{tpu_custom_call.1} parent=67 // pred_region
          %493 = dma.done %s486, 4096
        $region76: #{tpu_custom_call.1} parent=67 // pred_fallthru
          _
        // Predicated region
        $region77: #{tpu_custom_call.1} parent=67 // pred_check
          %p494 = pneg %p103
        $region78: #{tpu_custom_call.1} parent=67 // pred_check_branch
          %496 = sbr.rel (%p494) target = $region80
        $region79: #{tpu_custom_call.1} parent=67 // pred_region
          %497 = dma.done [#allocation6], 2048
        $region80: #{tpu_custom_call.1} parent=67 // pred_fallthru
          _
        // Predicated region
        $region81: #{tpu_custom_call.1} parent=67 // pred_check
          %p498 = pneg %p145
        $region82: #{tpu_custom_call.1} parent=67 // pred_check_branch
          %500 = sbr.rel (%p498) target = $region84
        $region83: #{tpu_custom_call.1} parent=67 // pred_region
          %501 = dma.done [#allocation9], 2048
        $region84: #{tpu_custom_call.1} parent=67 // pred_fallthru
          _
        // Predicated region
        $region85: #{tpu_custom_call.1} parent=67 // pred_check
          %p502 = pneg %p187
        $region86: #{tpu_custom_call.1} parent=67 // pred_check_branch
          %504 = sbr.rel (%p502) target = $region88
        $region87: #{tpu_custom_call.1} parent=67 // pred_region
          %505 = dma.done [#allocation9], 2048
        $region88: #{tpu_custom_call.1} parent=67 // pred_fallthru
          _
        // Predicated region
        $region89: #{tpu_custom_call.1} parent=67 // pred_check
          %p506 = pneg %p229
        $region90: #{tpu_custom_call.1} parent=67 // pred_check_branch
          %508 = sbr.rel (%p506) target = $region92
        $region91: #{tpu_custom_call.1} parent=67 // pred_region
          %509 = dma.done [#allocation12], 2048
        $region92: #{tpu_custom_call.1} parent=67 // pred_fallthru
          _
        // Predicated region
        $region93: #{tpu_custom_call.1} parent=67 // pred_check
          %p510 = pneg %p271
        $region94: #{tpu_custom_call.1} parent=67 // pred_check_branch
          %512 = sbr.rel (%p510) target = $region96
        $region95: #{tpu_custom_call.1} parent=67 // pred_region
          %513 = dma.done [#allocation12], 2048
        $region96: #{tpu_custom_call.1} parent=67 // pred_fallthru
          _
        // Predicated region
        $region97: #{tpu_custom_call.1} parent=67 // pred_check
          %p514 = pneg %p292
        $region98: #{tpu_custom_call.1} parent=67 // pred_check_branch
          %516 = sbr.rel (%p514) target = $region100
        $region99: #{tpu_custom_call.1} parent=67 // pred_region
          %517 = dma.done [#allocation15], 2048
        $region100: #{tpu_custom_call.1} parent=67 // pred_fallthru
          _
        %s518 = sand.u32 %s43, 1
        %s519 = scalar_lea.sflag [#allocation3], %s518
        %s520 = sand.u32 %s43, 1
        %s521 = smul.addr %s520, 256
        %s522 = scalar_lea.vmem [#allocation2], %s521
        %p523 = pneg %p56
        %p524 = pneg %p53
        %s525 = sand.u32 %s35, 1
        %s526 = scalar_lea.sflag [#allocation6], %s525
        %s527 = sand.u32 %s69, 1
        %s528 = smul.addr %s527, 256
        %s529 = scalar_lea.vmem [#allocation5], %s528
        %p530 = pneg %p82
        %p531 = pneg %p79
        %p532 = pneg %p103
        %p533 = pneg %p100
        %p534 = pneg %p124
        %p535 = pneg %p121
        %p536 = pneg %p145
        %p537 = pneg %p142
        %p538 = pneg %p166
        %p539 = pneg %p163
        %p540 = pneg %p187
        %p541 = pneg %p184
        %p542 = pneg %p208
        %p543 = pneg %p205
        %p544 = pneg %p229
        %p545 = pneg %p226
        %p546 = pneg %p250
        %p547 = pneg %p247
        %p548 = pneg %p271
        %p549 = pneg %p268
        %p550 = pneg %p292
        %p551 = pneg %p289
        %p552 = pneg %p318
        %p553 = pneg %p315
        %s554 = sand.u32 %s305, 1
        %s555 = scalar_lea.sflag [#allocation4], %s554
        %s556 = sand.u32 %s305, 1
        %s557 = smul.addr %s556, 128
        %s558 = scalar_lea.vmem [#allocation16], %s557
        %s559 = smul.u32 32, %s35
        %s560 = smul.u32 32, %s35
        %s561 = smul.u32 32, %s35
        %v563 = vld [vmem:[%s480] sm:$0xff]
        %v564 = vld [vmem:[%s480 + $0x8] sm:$0xff]
        %v565 = vld [vmem:[%s480 + $0x10] sm:$0xff]
        %v566 = vld [vmem:[%s480 + $0x18] sm:$0xff]
        %v567 = vld [vmem:[%s480 + $0x20] sm:$0xff]
        %v568 = vld [vmem:[%s480 + $0x28] sm:$0xff]
        %v569 = vld [vmem:[%s480 + $0x30] sm:$0xff]
        %v570 = vld [vmem:[%s480 + $0x38] sm:$0xff]
        %v571 = vld [vmem:[%s480 + $0x40] sm:$0xff]
        %v572 = vld [vmem:[%s480 + $0x48] sm:$0xff]
        %v573 = vld [vmem:[%s480 + $0x50] sm:$0xff]
        %v574 = vld [vmem:[%s480 + $0x58] sm:$0xff]
        %v575 = vld [vmem:[%s480 + $0x60] sm:$0xff]
        %v576 = vld [vmem:[%s480 + $0x68] sm:$0xff]
        %v577 = vld [vmem:[%s480 + $0x70] sm:$0xff]
        %v578 = vld [vmem:[%s480 + $0x78] sm:$0xff]
        %v579 = vld [vmem:[%s480 + $0x80] sm:$0xff]
        %v580 = vld [vmem:[%s480 + $0x88] sm:$0xff]
        %v581 = vld [vmem:[%s480 + $0x90] sm:$0xff]
        %v582 = vld [vmem:[%s480 + $0x98] sm:$0xff]
        %v583 = vld [vmem:[%s480 + $0xa0] sm:$0xff]
        %v584 = vld [vmem:[%s480 + $0xa8] sm:$0xff]
        %v585 = vld [vmem:[%s480 + $0xb0] sm:$0xff]
        %v586 = vld [vmem:[%s480 + $0xb8] sm:$0xff]
        %v587 = vld [vmem:[%s480 + $0xc0] sm:$0xff]
        %v588 = vld [vmem:[%s480 + $0xc8] sm:$0xff]
        %v589 = vld [vmem:[%s480 + $0xd0] sm:$0xff]
        %v590 = vld [vmem:[%s480 + $0xd8] sm:$0xff]
        %v591 = vld [vmem:[%s480 + $0xe0] sm:$0xff]
        %v592 = vld [vmem:[%s480 + $0xe8] sm:$0xff]
        %v593 = vld [vmem:[%s480 + $0xf0] sm:$0xff]
        %v594 = vld [vmem:[%s480 + $0xf8] sm:$0xff]
        %v595 = vld [vmem:[#allocation7] sm:$0xff]
        %v596 = vld [vmem:[#allocation7 + $0x8] sm:$0xff]
        %v597 = vld [vmem:[#allocation7 + $0x10] sm:$0xff]
        %v598 = vld [vmem:[#allocation7 + $0x18] sm:$0xff]
        %v599 = vld [vmem:[#allocation7 + $0x20] sm:$0xff]
        %v600 = vld [vmem:[#allocation7 + $0x28] sm:$0xff]
        %v601 = vld [vmem:[#allocation7 + $0x30] sm:$0xff]
        %v602 = vld [vmem:[#allocation7 + $0x38] sm:$0xff]
        %v603 = vld [vmem:[#allocation7 + $0x40] sm:$0xff]
        %v604 = vld [vmem:[#allocation7 + $0x48] sm:$0xff]
        %v605 = vld [vmem:[#allocation7 + $0x50] sm:$0xff]
        %v606 = vld [vmem:[#allocation7 + $0x58] sm:$0xff]
        %v607 = vld [vmem:[#allocation7 + $0x60] sm:$0xff]
        %v608 = vld [vmem:[#allocation7 + $0x68] sm:$0xff]
        %v609 = vld [vmem:[#allocation7 + $0x70] sm:$0xff]
        %v610 = vld [vmem:[#allocation7 + $0x78] sm:$0xff]
        %v611 = vpack.c.bf16 %v564, %v563
        %v612 = vpack.c.bf16 %v566, %v565
        %v613 = vpack.c.bf16 %v568, %v567
        %v614 = vpack.c.bf16 %v570, %v569
        %v615 = vpack.c.bf16 %v572, %v571
        %v616 = vpack.c.bf16 %v574, %v573
        %v617 = vpack.c.bf16 %v576, %v575
        %v618 = vpack.c.bf16 %v578, %v577
        %v619 = vpack.c.bf16 %v580, %v579
        %v620 = vpack.c.bf16 %v582, %v581
        %v621 = vpack.c.bf16 %v584, %v583
        %v622 = vpack.c.bf16 %v586, %v585
        %v623 = vpack.c.bf16 %v588, %v587
        %v624 = vpack.c.bf16 %v590, %v589
        %v625 = vpack.c.bf16 %v592, %v591
        %v626 = vpack.c.bf16 %v594, %v593
        %v627 = vpack.c.bf16 %v596, %v595
        %v628 = vpack.c.bf16 %v598, %v597
        %v629 = vpack.c.bf16 %v600, %v599
        %v630 = vpack.c.bf16 %v602, %v601
        %v631 = vpack.c.bf16 %v604, %v603
        %v632 = vpack.c.bf16 %v606, %v605
        %v633 = vpack.c.bf16 %v608, %v607
        %v634 = vpack.c.bf16 %v610, %v609
        %v635 = vld [vmem:[%s3] sm:$0x1]
        %v637 = vlaneseq
        %v638 = vshrl.u32 %v637, 7
        %v639 = vsub.s32 0, %v638
        %v640 = vrot.slane %v635, %v639
        %642 = vmatprep.subr.bf16.mxu0 0
        %643 = vmatpush1.bf16.msra.mxu0 %v627
        %644 = vmatprep.subr.bf16.mxu0 0
        %645 = vmatpush1.bf16.msra.mxu0 %v628
        %646 = vmatprep.subr.bf16.mxu0 0
        %647 = vmatpush1.bf16.msra.mxu0 %v629
        %648 = vmatprep.subr.bf16.mxu0 0
        %649 = vmatpush1.bf16.msra.mxu0 %v630
        %650 = vmatprep.subr.bf16.mxu0 0
        %651 = vmatpush1.bf16.msra.mxu0 %v631
        %652 = vmatprep.subr.bf16.mxu0 0
        %653 = vmatpush1.bf16.msra.mxu0 %v632
        %654 = vmatprep.subr.bf16.mxu0 0
        %655 = vmatpush1.bf16.msra.mxu0 %v633
        %656 = vmatprep.subr.bf16.mxu0 0
        %657 = vmatpush1.bf16.msra.mxu0 %v634
        %658 = vmatprep.subr.bf16.mxu0 0
        %659 = vmatpush1.bf16.msra.mxu0 0
        %660 = vmatprep.subr.bf16.mxu0 0
        %661 = vmatpush1.bf16.msra.mxu0 0
        %662 = vmatprep.subr.bf16.mxu0 0
        %663 = vmatpush1.bf16.msra.mxu0 0
        %664 = vmatprep.subr.bf16.mxu0 0
        %665 = vmatpush1.bf16.msra.mxu0 0
        %666 = vmatprep.subr.bf16.mxu0 0
        %667 = vmatpush1.bf16.msra.mxu0 0
        %668 = vmatprep.subr.bf16.mxu0 0
        %669 = vmatpush1.bf16.msra.mxu0 0
        %670 = vmatprep.subr.bf16.mxu0 0
        %671 = vmatpush1.bf16.msra.mxu0 0
        %672 = vmatprep.subr.bf16.mxu0 0
        %673 = vmatpush1.bf16.msra.mxu0 0
        %674 = vmatprep.mubr.bf16.mxu0 0
        %675 = vmatmul.mubr.bf16.gmra.mrb[0].mxu0 %v611
        %v676 = vpop.f32.mrb[0].mxu0
        %v677 = vadd.f32 %v640, %v676
        %v678 = vpop.f32.mrb[0].mxu0
        %v679 = vpop.f32.mrb[0].mxu0
        %v680 = vadd.f32 %v640, %v679
        %v681 = vpop.f32.mrb[0].mxu0
        %682 = vmatprep.mubr.bf16.mxu0 0
        %683 = vmatmul.mubr.bf16.gmra.mrb[0].mxu0 %v612
        %v684 = vpop.f32.mrb[0].mxu0
        %v685 = vadd.f32 %v640, %v684
        %v686 = vpop.f32.mrb[0].mxu0
        %v687 = vpop.f32.mrb[0].mxu0
        %v688 = vadd.f32 %v640, %v687
        %v689 = vpop.f32.mrb[0].mxu0
        %690 = vmatprep.mubr.bf16.mxu0 0
        %691 = vmatmul.mubr.bf16.gmra.mrb[0].mxu0 %v613
        %v692 = vpop.f32.mrb[0].mxu0
        %v693 = vadd.f32 %v640, %v692
        %v694 = vpop.f32.mrb[0].mxu0
        %v695 = vpop.f32.mrb[0].mxu0
        %v696 = vadd.f32 %v640, %v695
        %v697 = vpop.f32.mrb[0].mxu0
        %698 = vmatprep.mubr.bf16.mxu0 0
        %699 = vmatmul.mubr.bf16.gmra.mrb[0].mxu0 %v614
        %v700 = vpop.f32.mrb[0].mxu0
        %v701 = vadd.f32 %v640, %v700
        %v702 = vpop.f32.mrb[0].mxu0
        %v703 = vpop.f32.mrb[0].mxu0
        %v704 = vadd.f32 %v640, %v703
        %v705 = vpop.f32.mrb[0].mxu0
        %706 = vmatprep.mubr.bf16.mxu0 0
        %707 = vmatmul.mubr.bf16.gmra.mrb[0].mxu0 %v615
        %v708 = vpop.f32.mrb[0].mxu0
        %v709 = vadd.f32 %v640, %v708
        %v710 = vpop.f32.mrb[0].mxu0
        %v711 = vpop.f32.mrb[0].mxu0
        %v712 = vadd.f32 %v640, %v711
        %v713 = vpop.f32.mrb[0].mxu0
        %714 = vmatprep.mubr.bf16.mxu0 0
        %715 = vmatmul.mubr.bf16.gmra.mrb[0].mxu0 %v616
        %v716 = vpop.f32.mrb[0].mxu0
        %v717 = vadd.f32 %v640, %v716
        %v718 = vpop.f32.mrb[0].mxu0
        %v719 = vpop.f32.mrb[0].mxu0
        %v720 = vadd.f32 %v640, %v719
        %v721 = vpop.f32.mrb[0].mxu0
        %722 = vmatprep.mubr.bf16.mxu0 0
        %723 = vmatmul.mubr.bf16.gmra.mrb[0].mxu0 %v617
        %v724 = vpop.f32.mrb[0].mxu0
        %v725 = vadd.f32 %v640, %v724
        %v726 = vpop.f32.mrb[0].mxu0
        %v727 = vpop.f32.mrb[0].mxu0
        %v728 = vadd.f32 %v640, %v727
        %v729 = vpop.f32.mrb[0].mxu0
        %730 = vmatprep.mubr.bf16.mxu0 0
        %731 = vmatmul.mubr.bf16.gmra.mrb[0].mxu0 %v618
        %v732 = vpop.f32.mrb[0].mxu0
        %v733 = vadd.f32 %v640, %v732
        %v734 = vpop.f32.mrb[0].mxu0
        %v735 = vpop.f32.mrb[0].mxu0
        %v736 = vadd.f32 %v640, %v735
        %v737 = vpop.f32.mrb[0].mxu0
        %738 = vmatprep.mubr.bf16.mxu0 0
        %739 = vmatmul.mubr.bf16.gmra.mrb[0].mxu0 %v619
        %v740 = vpop.f32.mrb[0].mxu0
        %v741 = vadd.f32 %v640, %v740
        %v742 = vpop.f32.mrb[0].mxu0
        %v743 = vpop.f32.mrb[0].mxu0
        %v744 = vadd.f32 %v640, %v743
        %v745 = vpop.f32.mrb[0].mxu0
        %746 = vmatprep.mubr.bf16.mxu0 0
        %747 = vmatmul.mubr.bf16.gmra.mrb[0].mxu0 %v620
        %v748 = vpop.f32.mrb[0].mxu0
        %v749 = vadd.f32 %v640, %v748
        %v750 = vpop.f32.mrb[0].mxu0
        %v751 = vpop.f32.mrb[0].mxu0
        %v752 = vadd.f32 %v640, %v751
        %v753 = vpop.f32.mrb[0].mxu0
        %754 = vmatprep.mubr.bf16.mxu0 0
        %755 = vmatmul.mubr.bf16.gmra.mrb[0].mxu0 %v621
        %v756 = vpop.f32.mrb[0].mxu0
        %v757 = vadd.f32 %v640, %v756
        %v758 = vpop.f32.mrb[0].mxu0
        %v759 = vpop.f32.mrb[0].mxu0
        %v760 = vadd.f32 %v640, %v759
        %v761 = vpop.f32.mrb[0].mxu0
        %762 = vmatprep.mubr.bf16.mxu0 0
        %763 = vmatmul.mubr.bf16.gmra.mrb[0].mxu0 %v622
        %v764 = vpop.f32.mrb[0].mxu0
        %v765 = vadd.f32 %v640, %v764
        %v766 = vpop.f32.mrb[0].mxu0
        %v767 = vpop.f32.mrb[0].mxu0
        %v768 = vadd.f32 %v640, %v767
        %v769 = vpop.f32.mrb[0].mxu0
        %770 = vmatprep.mubr.bf16.mxu0 0
        %771 = vmatmul.mubr.bf16.gmra.mrb[0].mxu0 %v623
        %v772 = vpop.f32.mrb[0].mxu0
        %v773 = vadd.f32 %v640, %v772
        %v774 = vpop.f32.mrb[0].mxu0
        %v775 = vpop.f32.mrb[0].mxu0
        %v776 = vadd.f32 %v640, %v775
        %v777 = vpop.f32.mrb[0].mxu0
        %778 = vmatprep.mubr.bf16.mxu0 0
        %779 = vmatmul.mubr.bf16.gmra.mrb[0].mxu0 %v624
        %v780 = vpop.f32.mrb[0].mxu0
        %v781 = vadd.f32 %v640, %v780
        %v782 = vpop.f32.mrb[0].mxu0
        %v783 = vpop.f32.mrb[0].mxu0
        %v784 = vadd.f32 %v640, %v783
        %v785 = vpop.f32.mrb[0].mxu0
        %786 = vmatprep.mubr.bf16.mxu0 0
        %787 = vmatmul.mubr.bf16.gmra.mrb[0].mxu0 %v625
        %v788 = vpop.f32.mrb[0].mxu0
        %v789 = vadd.f32 %v640, %v788
        %v790 = vpop.f32.mrb[0].mxu0
        %v791 = vpop.f32.mrb[0].mxu0
        %v792 = vadd.f32 %v640, %v791
        %v793 = vpop.f32.mrb[0].mxu0
        %794 = vmatprep.mubr.bf16.mxu0 0
        %795 = vmatmul.mubr.bf16.gmra.mrb[0].mxu0 %v626
        %v796 = vpop.f32.mrb[0].mxu0
        %v797 = vadd.f32 %v640, %v796
        %v798 = vpop.f32.mrb[0].mxu0
        %v799 = vpop.f32.mrb[0].mxu0
        %v800 = vadd.f32 %v640, %v799
        %v801 = vpop.f32.mrb[0].mxu0
        %802 = vdwg.mxu0
        %v803 = vmax.f32 %v677, 0.0
        %v804 = vmax.f32 %v680, 0.0
        %v805 = vmax.f32 %v685, 0.0
        %v806 = vmax.f32 %v688, 0.0
        %v807 = vmax.f32 %v693, 0.0
        %v808 = vmax.f32 %v696, 0.0
        %v809 = vmax.f32 %v701, 0.0
        %v810 = vmax.f32 %v704, 0.0
        %v811 = vmax.f32 %v709, 0.0
        %v812 = vmax.f32 %v712, 0.0
        %v813 = vmax.f32 %v717, 0.0
        %v814 = vmax.f32 %v720, 0.0
        %v815 = vmax.f32 %v725, 0.0
        %v816 = vmax.f32 %v728, 0.0
        %v817 = vmax.f32 %v733, 0.0
        %v818 = vmax.f32 %v736, 0.0
        %v819 = vmax.f32 %v741, 0.0
        %v820 = vmax.f32 %v744, 0.0
        %v821 = vmax.f32 %v749, 0.0
        %v822 = vmax.f32 %v752, 0.0
        %v823 = vmax.f32 %v757, 0.0
        %v824 = vmax.f32 %v760, 0.0
        %v825 = vmax.f32 %v765, 0.0
        %v826 = vmax.f32 %v768, 0.0
        %v827 = vmax.f32 %v773, 0.0
        %v828 = vmax.f32 %v776, 0.0
        %v829 = vmax.f32 %v781, 0.0
        %v830 = vmax.f32 %v784, 0.0
        %v831 = vmax.f32 %v789, 0.0
        %v832 = vmax.f32 %v792, 0.0
        %v833 = vmax.f32 %v797, 0.0
        %v834 = vmax.f32 %v800, 0.0
        %v835 = vld [vmem:[#allocation8] sm:$0xff]
        %v836 = vld [vmem:[#allocation8 + $0x8] sm:$0xff]
        %v837 = vld [vmem:[#allocation8 + $0x10] sm:$0xff]
        %v838 = vld [vmem:[#allocation8 + $0x18] sm:$0xff]
        %v839 = vld [vmem:[#allocation8 + $0x20] sm:$0xff]
        %v840 = vld [vmem:[#allocation8 + $0x28] sm:$0xff]
        %v841 = vld [vmem:[#allocation8 + $0x30] sm:$0xff]
        %v842 = vld [vmem:[#allocation8 + $0x38] sm:$0xff]
        %v843 = vld [vmem:[#allocation8 + $0x40] sm:$0xff]
        %v844 = vld [vmem:[#allocation8 + $0x48] sm:$0xff]
        %v845 = vld [vmem:[#allocation8 + $0x50] sm:$0xff]
        %v846 = vld [vmem:[#allocation8 + $0x58] sm:$0xff]
        %v847 = vld [vmem:[#allocation8 + $0x60] sm:$0xff]
        %v848 = vld [vmem:[#allocation8 + $0x68] sm:$0xff]
        %v849 = vld [vmem:[#allocation8 + $0x70] sm:$0xff]
        %v850 = vld [vmem:[#allocation8 + $0x78] sm:$0xff]
        %v851 = vpack.c.bf16 %v804, %v803
        %v852 = vpack.c.bf16 %v806, %v805
        %v853 = vpack.c.bf16 %v808, %v807
        %v854 = vpack.c.bf16 %v810, %v809
        %v855 = vpack.c.bf16 %v812, %v811
        %v856 = vpack.c.bf16 %v814, %v813
        %v857 = vpack.c.bf16 %v816, %v815
        %v858 = vpack.c.bf16 %v818, %v817
        %v859 = vpack.c.bf16 %v820, %v819
        %v860 = vpack.c.bf16 %v822, %v821
        %v861 = vpack.c.bf16 %v824, %v823
        %v862 = vpack.c.bf16 %v826, %v825
        %v863 = vpack.c.bf16 %v828, %v827
        %v864 = vpack.c.bf16 %v830, %v829
        %v865 = vpack.c.bf16 %v832, %v831
        %v866 = vpack.c.bf16 %v834, %v833
        %v867 = vpack.c.bf16 %v836, %v835
        %v868 = vpack.c.bf16 %v838, %v837
        %v869 = vpack.c.bf16 %v840, %v839
        %v870 = vpack.c.bf16 %v842, %v841
        %v871 = vpack.c.bf16 %v844, %v843
        %v872 = vpack.c.bf16 %v846, %v845
        %v873 = vpack.c.bf16 %v848, %v847
        %v874 = vpack.c.bf16 %v850, %v849
        %v875 = vld [vmem:[%s5] sm:$0x1]
        %v877 = vlaneseq
        %v878 = vshrl.u32 %v877, 7
        %v879 = vsub.s32 0, %v878
        %v880 = vrot.slane %v875, %v879
        %882 = vmatprep.subr.bf16.mxu0 0
        %883 = vmatpush1.bf16.msra.mxu0 %v867
        %884 = vmatprep.subr.bf16.mxu0 0
        %885 = vmatpush1.bf16.msra.mxu0 %v868
        %886 = vmatprep.subr.bf16.mxu0 0
        %887 = vmatpush1.bf16.msra.mxu0 %v869
        %888 = vmatprep.subr.bf16.mxu0 0
        %889 = vmatpush1.bf16.msra.mxu0 %v870
        %890 = vmatprep.subr.bf16.mxu0 0
        %891 = vmatpush1.bf16.msra.mxu0 %v871
        %892 = vmatprep.subr.bf16.mxu0 0
        %893 = vmatpush1.bf16.msra.mxu0 %v872
        %894 = vmatprep.subr.bf16.mxu0 0
        %895 = vmatpush1.bf16.msra.mxu0 %v873
        %896 = vmatprep.subr.bf16.mxu0 0
        %897 = vmatpush1.bf16.msra.mxu0 %v874
        %898 = vmatprep.subr.bf16.mxu0 0
        %899 = vmatpush1.bf16.msra.mxu0 0
        %900 = vmatprep.subr.bf16.mxu0 0
        %901 = vmatpush1.bf16.msra.mxu0 0
        %902 = vmatprep.subr.bf16.mxu0 0
        %903 = vmatpush1.bf16.msra.mxu0 0
        %904 = vmatprep.subr.bf16.mxu0 0
        %905 = vmatpush1.bf16.msra.mxu0 0
        %906 = vmatprep.subr.bf16.mxu0 0
        %907 = vmatpush1.bf16.msra.mxu0 0
        %908 = vmatprep.subr.bf16.mxu0 0
        %909 = vmatpush1.bf16.msra.mxu0 0
        %910 = vmatprep.subr.bf16.mxu0 0
        %911 = vmatpush1.bf16.msra.mxu0 0
        %912 = vmatprep.subr.bf16.mxu0 0
        %913 = vmatpush1.bf16.msra.mxu0 0
        %914 = vmatprep.mubr.bf16.mxu0 0
        %915 = vmatmul.mubr.bf16.gmra.mrb[0].mxu0 %v851
        %v916 = vpop.f32.mrb[0].mxu0
        %v917 = vadd.f32 %v880, %v916
        %v918 = vpop.f32.mrb[0].mxu0
        %v919 = vpop.f32.mrb[0].mxu0
        %v920 = vadd.f32 %v880, %v919
        %v921 = vpop.f32.mrb[0].mxu0
        %922 = vmatprep.mubr.bf16.mxu0 0
        %923 = vmatmul.mubr.bf16.gmra.mrb[0].mxu0 %v852
        %v924 = vpop.f32.mrb[0].mxu0
        %v925 = vadd.f32 %v880, %v924
        %v926 = vpop.f32.mrb[0].mxu0
        %v927 = vpop.f32.mrb[0].mxu0
        %v928 = vadd.f32 %v880, %v927
        %v929 = vpop.f32.mrb[0].mxu0
        %930 = vmatprep.mubr.bf16.mxu0 0
        %931 = vmatmul.mubr.bf16.gmra.mrb[0].mxu0 %v853
        %v932 = vpop.f32.mrb[0].mxu0
        %v933 = vadd.f32 %v880, %v932
        %v934 = vpop.f32.mrb[0].mxu0
        %v935 = vpop.f32.mrb[0].mxu0
        %v936 = vadd.f32 %v880, %v935
        %v937 = vpop.f32.mrb[0].mxu0
        %938 = vmatprep.mubr.bf16.mxu0 0
        %939 = vmatmul.mubr.bf16.gmra.mrb[0].mxu0 %v854
        %v940 = vpop.f32.mrb[0].mxu0
        %v941 = vadd.f32 %v880, %v940
        %v942 = vpop.f32.mrb[0].mxu0
        %v943 = vpop.f32.mrb[0].mxu0
        %v944 = vadd.f32 %v880, %v943
        %v945 = vpop.f32.mrb[0].mxu0
        %946 = vmatprep.mubr.bf16.mxu0 0
        %947 = vmatmul.mubr.bf16.gmra.mrb[0].mxu0 %v855
        %v948 = vpop.f32.mrb[0].mxu0
        %v949 = vadd.f32 %v880, %v948
        %v950 = vpop.f32.mrb[0].mxu0
        %v951 = vpop.f32.mrb[0].mxu0
        %v952 = vadd.f32 %v880, %v951
        %v953 = vpop.f32.mrb[0].mxu0
        %954 = vmatprep.mubr.bf16.mxu0 0
        %955 = vmatmul.mubr.bf16.gmra.mrb[0].mxu0 %v856
        %v956 = vpop.f32.mrb[0].mxu0
        %v957 = vadd.f32 %v880, %v956
        %v958 = vpop.f32.mrb[0].mxu0
        %v959 = vpop.f32.mrb[0].mxu0
        %v960 = vadd.f32 %v880, %v959
        %v961 = vpop.f32.mrb[0].mxu0
        %962 = vmatprep.mubr.bf16.mxu0 0
        %963 = vmatmul.mubr.bf16.gmra.mrb[0].mxu0 %v857
        %v964 = vpop.f32.mrb[0].mxu0
        %v965 = vadd.f32 %v880, %v964
        %v966 = vpop.f32.mrb[0].mxu0
        %v967 = vpop.f32.mrb[0].mxu0
        %v968 = vadd.f32 %v880, %v967
        %v969 = vpop.f32.mrb[0].mxu0
        %970 = vmatprep.mubr.bf16.mxu0 0
        %971 = vmatmul.mubr.bf16.gmra.mrb[0].mxu0 %v858
        %v972 = vpop.f32.mrb[0].mxu0
        %v973 = vadd.f32 %v880, %v972
        %v974 = vpop.f32.mrb[0].mxu0
        %v975 = vpop.f32.mrb[0].mxu0
        %v976 = vadd.f32 %v880, %v975
        %v977 = vpop.f32.mrb[0].mxu0
        %978 = vmatprep.mubr.bf16.mxu0 0
        %979 = vmatmul.mubr.bf16.gmra.mrb[0].mxu0 %v859
        %v980 = vpop.f32.mrb[0].mxu0
        %v981 = vadd.f32 %v880, %v980
        %v982 = vpop.f32.mrb[0].mxu0
        %v983 = vpop.f32.mrb[0].mxu0
        %v984 = vadd.f32 %v880, %v983
        %v985 = vpop.f32.mrb[0].mxu0
        %986 = vmatprep.mubr.bf16.mxu0 0
        %987 = vmatmul.mubr.bf16.gmra.mrb[0].mxu0 %v860
        %v988 = vpop.f32.mrb[0].mxu0
        %v989 = vadd.f32 %v880, %v988
        %v990 = vpop.f32.mrb[0].mxu0
        %v991 = vpop.f32.mrb[0].mxu0
        %v992 = vadd.f32 %v880, %v991
        %v993 = vpop.f32.mrb[0].mxu0
        %994 = vmatprep.mubr.bf16.mxu0 0
        %995 = vmatmul.mubr.bf16.gmra.mrb[0].mxu0 %v861
        %v996 = vpop.f32.mrb[0].mxu0
        %v997 = vadd.f32 %v880, %v996
        %v998 = vpop.f32.mrb[0].mxu0
        %v999 = vpop.f32.mrb[0].mxu0
        %v1000 = vadd.f32 %v880, %v999
        %v1001 = vpop.f32.mrb[0].mxu0
        %1002 = vmatprep.mubr.bf16.mxu0 0
        %1003 = vmatmul.mubr.bf16.gmra.mrb[0].mxu0 %v862
        %v1004 = vpop.f32.mrb[0].mxu0
        %v1005 = vadd.f32 %v880, %v1004
        %v1006 = vpop.f32.mrb[0].mxu0
        %v1007 = vpop.f32.mrb[0].mxu0
        %v1008 = vadd.f32 %v880, %v1007
        %v1009 = vpop.f32.mrb[0].mxu0
        %1010 = vmatprep.mubr.bf16.mxu0 0
        %1011 = vmatmul.mubr.bf16.gmra.mrb[0].mxu0 %v863
        %v1012 = vpop.f32.mrb[0].mxu0
        %v1013 = vadd.f32 %v880, %v1012
        %v1014 = vpop.f32.mrb[0].mxu0
        %v1015 = vpop.f32.mrb[0].mxu0
        %v1016 = vadd.f32 %v880, %v1015
        %v1017 = vpop.f32.mrb[0].mxu0
        %1018 = vmatprep.mubr.bf16.mxu0 0
        %1019 = vmatmul.mubr.bf16.gmra.mrb[0].mxu0 %v864
        %v1020 = vpop.f32.mrb[0].mxu0
        %v1021 = vadd.f32 %v880, %v1020
        %v1022 = vpop.f32.mrb[0].mxu0
        %v1023 = vpop.f32.mrb[0].mxu0
        %v1024 = vadd.f32 %v880, %v1023
        %v1025 = vpop.f32.mrb[0].mxu0
        %1026 = vmatprep.mubr.bf16.mxu0 0
        %1027 = vmatmul.mubr.bf16.gmra.mrb[0].mxu0 %v865
        %v1028 = vpop.f32.mrb[0].mxu0
        %v1029 = vadd.f32 %v880, %v1028
        %v1030 = vpop.f32.mrb[0].mxu0
        %v1031 = vpop.f32.mrb[0].mxu0
        %v1032 = vadd.f32 %v880, %v1031
        %v1033 = vpop.f32.mrb[0].mxu0
        %1034 = vmatprep.mubr.bf16.mxu0 0
        %1035 = vmatmul.mubr.bf16.gmra.mrb[0].mxu0 %v866
        %v1036 = vpop.f32.mrb[0].mxu0
        %v1037 = vadd.f32 %v880, %v1036
        %v1038 = vpop.f32.mrb[0].mxu0
        %v1039 = vpop.f32.mrb[0].mxu0
        %v1040 = vadd.f32 %v880, %v1039
        %v1041 = vpop.f32.mrb[0].mxu0
        %1042 = vdwg.mxu0
        %v1043 = vmax.f32 %v917, 0.0
        %v1044 = vmax.f32 %v920, 0.0
        %v1045 = vmax.f32 %v925, 0.0
        %v1046 = vmax.f32 %v928, 0.0
        %v1047 = vmax.f32 %v933, 0.0
        %v1048 = vmax.f32 %v936, 0.0
        %v1049 = vmax.f32 %v941, 0.0
        %v1050 = vmax.f32 %v944, 0.0
        %v1051 = vmax.f32 %v949, 0.0
        %v1052 = vmax.f32 %v952, 0.0
        %v1053 = vmax.f32 %v957, 0.0
        %v1054 = vmax.f32 %v960, 0.0
        %v1055 = vmax.f32 %v965, 0.0
        %v1056 = vmax.f32 %v968, 0.0
        %v1057 = vmax.f32 %v973, 0.0
        %v1058 = vmax.f32 %v976, 0.0
        %v1059 = vmax.f32 %v981, 0.0
        %v1060 = vmax.f32 %v984, 0.0
        %v1061 = vmax.f32 %v989, 0.0
        %v1062 = vmax.f32 %v992, 0.0
        %v1063 = vmax.f32 %v997, 0.0
        %v1064 = vmax.f32 %v1000, 0.0
        %v1065 = vmax.f32 %v1005, 0.0
        %v1066 = vmax.f32 %v1008, 0.0
        %v1067 = vmax.f32 %v1013, 0.0
        %v1068 = vmax.f32 %v1016, 0.0
        %v1069 = vmax.f32 %v1021, 0.0
        %v1070 = vmax.f32 %v1024, 0.0
        %v1071 = vmax.f32 %v1029, 0.0
        %v1072 = vmax.f32 %v1032, 0.0
        %v1073 = vmax.f32 %v1037, 0.0
        %v1074 = vmax.f32 %v1040, 0.0
        %v1075 = vld [vmem:[%s489] sm:$0xff]
        %v1076 = vld [vmem:[%s489 + $0x8] sm:$0xff]
        %v1077 = vld [vmem:[%s489 + $0x10] sm:$0xff]
        %v1078 = vld [vmem:[%s489 + $0x18] sm:$0xff]
        %v1079 = vld [vmem:[%s489 + $0x20] sm:$0xff]
        %v1080 = vld [vmem:[%s489 + $0x28] sm:$0xff]
        %v1081 = vld [vmem:[%s489 + $0x30] sm:$0xff]
        %v1082 = vld [vmem:[%s489 + $0x38] sm:$0xff]
        %v1083 = vld [vmem:[%s489 + $0x40] sm:$0xff]
        %v1084 = vld [vmem:[%s489 + $0x48] sm:$0xff]
        %v1085 = vld [vmem:[%s489 + $0x50] sm:$0xff]
        %v1086 = vld [vmem:[%s489 + $0x58] sm:$0xff]
        %v1087 = vld [vmem:[%s489 + $0x60] sm:$0xff]
        %v1088 = vld [vmem:[%s489 + $0x68] sm:$0xff]
        %v1089 = vld [vmem:[%s489 + $0x70] sm:$0xff]
        %v1090 = vld [vmem:[%s489 + $0x78] sm:$0xff]
        %v1091 = vld [vmem:[%s489 + $0x80] sm:$0xff]
        %v1092 = vld [vmem:[%s489 + $0x88] sm:$0xff]
        %v1093 = vld [vmem:[%s489 + $0x90] sm:$0xff]
        %v1094 = vld [vmem:[%s489 + $0x98] sm:$0xff]
        %v1095 = vld [vmem:[%s489 + $0xa0] sm:$0xff]
        %v1096 = vld [vmem:[%s489 + $0xa8] sm:$0xff]
        %v1097 = vld [vmem:[%s489 + $0xb0] sm:$0xff]
        %v1098 = vld [vmem:[%s489 + $0xb8] sm:$0xff]
        %v1099 = vld [vmem:[%s489 + $0xc0] sm:$0xff]
        %v1100 = vld [vmem:[%s489 + $0xc8] sm:$0xff]
        %v1101 = vld [vmem:[%s489 + $0xd0] sm:$0xff]
        %v1102 = vld [vmem:[%s489 + $0xd8] sm:$0xff]
        %v1103 = vld [vmem:[%s489 + $0xe0] sm:$0xff]
        %v1104 = vld [vmem:[%s489 + $0xe8] sm:$0xff]
        %v1105 = vld [vmem:[%s489 + $0xf0] sm:$0xff]
        %v1106 = vld [vmem:[%s489 + $0xf8] sm:$0xff]
        %v1107 = vld [vmem:[#allocation10] sm:$0xff]
        %v1108 = vld [vmem:[#allocation10 + $0x8] sm:$0xff]
        %v1109 = vld [vmem:[#allocation10 + $0x10] sm:$0xff]
        %v1110 = vld [vmem:[#allocation10 + $0x18] sm:$0xff]
        %v1111 = vld [vmem:[#allocation10 + $0x20] sm:$0xff]
        %v1112 = vld [vmem:[#allocation10 + $0x28] sm:$0xff]
        %v1113 = vld [vmem:[#allocation10 + $0x30] sm:$0xff]
        %v1114 = vld [vmem:[#allocation10 + $0x38] sm:$0xff]
        %v1115 = vld [vmem:[#allocation10 + $0x40] sm:$0xff]
        %v1116 = vld [vmem:[#allocation10 + $0x48] sm:$0xff]
        %v1117 = vld [vmem:[#allocation10 + $0x50] sm:$0xff]
        %v1118 = vld [vmem:[#allocation10 + $0x58] sm:$0xff]
        %v1119 = vld [vmem:[#allocation10 + $0x60] sm:$0xff]
        %v1120 = vld [vmem:[#allocation10 + $0x68] sm:$0xff]
        %v1121 = vld [vmem:[#allocation10 + $0x70] sm:$0xff]
        %v1122 = vld [vmem:[#allocation10 + $0x78] sm:$0xff]
        %v1123 = vpack.c.bf16 %v1076, %v1075
        %v1124 = vpack.c.bf16 %v1078, %v1077
        %v1125 = vpack.c.bf16 %v1080, %v1079
        %v1126 = vpack.c.bf16 %v1082, %v1081
        %v1127 = vpack.c.bf16 %v1084, %v1083
        %v1128 = vpack.c.bf16 %v1086, %v1085
        %v1129 = vpack.c.bf16 %v1088, %v1087
        %v1130 = vpack.c.bf16 %v1090, %v1089
        %v1131 = vpack.c.bf16 %v1092, %v1091
        %v1132 = vpack.c.bf16 %v1094, %v1093
        %v1133 = vpack.c.bf16 %v1096, %v1095
        %v1134 = vpack.c.bf16 %v1098, %v1097
        %v1135 = vpack.c.bf16 %v1100, %v1099
        %v1136 = vpack.c.bf16 %v1102, %v1101
        %v1137 = vpack.c.bf16 %v1104, %v1103
        %v1138 = vpack.c.bf16 %v1106, %v1105
        %v1139 = vpack.c.bf16 %v1108, %v1107
        %v1140 = vpack.c.bf16 %v1110, %v1109
        %v1141 = vpack.c.bf16 %v1112, %v1111
        %v1142 = vpack.c.bf16 %v1114, %v1113
        %v1143 = vpack.c.bf16 %v1116, %v1115
        %v1144 = vpack.c.bf16 %v1118, %v1117
        %v1145 = vpack.c.bf16 %v1120, %v1119
        %v1146 = vpack.c.bf16 %v1122, %v1121
        %v1147 = vld [vmem:[%s7] sm:$0x1]
        %v1149 = vlaneseq
        %v1150 = vshrl.u32 %v1149, 7
        %v1151 = vsub.s32 0, %v1150
        %v1152 = vrot.slane %v1147, %v1151
        %1154 = vmatprep.subr.bf16.mxu0 0
        %1155 = vmatpush1.bf16.msra.mxu0 %v1139
        %1156 = vmatprep.subr.bf16.mxu0 0
        %1157 = vmatpush1.bf16.msra.mxu0 %v1140
        %1158 = vmatprep.subr.bf16.mxu0 0
        %1159 = vmatpush1.bf16.msra.mxu0 %v1141
        %1160 = vmatprep.subr.bf16.mxu0 0
        %1161 = vmatpush1.bf16.msra.mxu0 %v1142
        %1162 = vmatprep.subr.bf16.mxu0 0
        %1163 = vmatpush1.bf16.msra.mxu0 %v1143
        %1164 = vmatprep.subr.bf16.mxu0 0
        %1165 = vmatpush1.bf16.msra.mxu0 %v1144
        %1166 = vmatprep.subr.bf16.mxu0 0
        %1167 = vmatpush1.bf16.msra.mxu0 %v1145
        %1168 = vmatprep.subr.bf16.mxu0 0
        %1169 = vmatpush1.bf16.msra.mxu0 %v1146
        %1170 = vmatprep.subr.bf16.mxu0 0
        %1171 = vmatpush1.bf16.msra.mxu0 0
        %1172 = vmatprep.subr.bf16.mxu0 0
        %1173 = vmatpush1.bf16.msra.mxu0 0
        %1174 = vmatprep.subr.bf16.mxu0 0
        %1175 = vmatpush1.bf16.msra.mxu0 0
        %1176 = vmatprep.subr.bf16.mxu0 0
        %1177 = vmatpush1.bf16.msra.mxu0 0
        %1178 = vmatprep.subr.bf16.mxu0 0
        %1179 = vmatpush1.bf16.msra.mxu0 0
        %1180 = vmatprep.subr.bf16.mxu0 0
        %1181 = vmatpush1.bf16.msra.mxu0 0
        %1182 = vmatprep.subr.bf16.mxu0 0
        %1183 = vmatpush1.bf16.msra.mxu0 0
        %1184 = vmatprep.subr.bf16.mxu0 0
        %1185 = vmatpush1.bf16.msra.mxu0 0
        %1186 = vmatprep.mubr.bf16.mxu0 0
        %1187 = vmatmul.mubr.bf16.gmra.mrb[0].mxu0 %v1123
        %v1188 = vpop.f32.mrb[0].mxu0
        %v1189 = vadd.f32 %v1152, %v1188
        %v1190 = vpop.f32.mrb[0].mxu0
        %v1191 = vpop.f32.mrb[0].mxu0
        %v1192 = vadd.f32 %v1152, %v1191
        %v1193 = vpop.f32.mrb[0].mxu0
        %1194 = vmatprep.mubr.bf16.mxu0 0
        %1195 = vmatmul.mubr.bf16.gmra.mrb[0].mxu0 %v1124
        %v1196 = vpop.f32.mrb[0].mxu0
        %v1197 = vadd.f32 %v1152, %v1196
        %v1198 = vpop.f32.mrb[0].mxu0
        %v1199 = vpop.f32.mrb[0].mxu0
        %v1200 = vadd.f32 %v1152, %v1199
        %v1201 = vpop.f32.mrb[0].mxu0
        %1202 = vmatprep.mubr.bf16.mxu0 0
        %1203 = vmatmul.mubr.bf16.gmra.mrb[0].mxu0 %v1125
        %v1204 = vpop.f32.mrb[0].mxu0
        %v1205 = vadd.f32 %v1152, %v1204
        %v1206 = vpop.f32.mrb[0].mxu0
        %v1207 = vpop.f32.mrb[0].mxu0
        %v1208 = vadd.f32 %v1152, %v1207
        %v1209 = vpop.f32.mrb[0].mxu0
        %1210 = vmatprep.mubr.bf16.mxu0 0
        %1211 = vmatmul.mubr.bf16.gmra.mrb[0].mxu0 %v1126
        %v1212 = vpop.f32.mrb[0].mxu0
        %v1213 = vadd.f32 %v1152, %v1212
        %v1214 = vpop.f32.mrb[0].mxu0
        %v1215 = vpop.f32.mrb[0].mxu0
        %v1216 = vadd.f32 %v1152, %v1215
        %v1217 = vpop.f32.mrb[0].mxu0
        %1218 = vmatprep.mubr.bf16.mxu0 0
        %1219 = vmatmul.mubr.bf16.gmra.mrb[0].mxu0 %v1127
        %v1220 = vpop.f32.mrb[0].mxu0
        %v1221 = vadd.f32 %v1152, %v1220
        %v1222 = vpop.f32.mrb[0].mxu0
        %v1223 = vpop.f32.mrb[0].mxu0
        %v1224 = vadd.f32 %v1152, %v1223
        %v1225 = vpop.f32.mrb[0].mxu0
        %1226 = vmatprep.mubr.bf16.mxu0 0
        %1227 = vmatmul.mubr.bf16.gmra.mrb[0].mxu0 %v1128
        %v1228 = vpop.f32.mrb[0].mxu0
        %v1229 = vadd.f32 %v1152, %v1228
        %v1230 = vpop.f32.mrb[0].mxu0
        %v1231 = vpop.f32.mrb[0].mxu0
        %v1232 = vadd.f32 %v1152, %v1231
        %v1233 = vpop.f32.mrb[0].mxu0
        %1234 = vmatprep.mubr.bf16.mxu0 0
        %1235 = vmatmul.mubr.bf16.gmra.mrb[0].mxu0 %v1129
        %v1236 = vpop.f32.mrb[0].mxu0
        %v1237 = vadd.f32 %v1152, %v1236
        %v1238 = vpop.f32.mrb[0].mxu0
        %v1239 = vpop.f32.mrb[0].mxu0
        %v1240 = vadd.f32 %v1152, %v1239
        %v1241 = vpop.f32.mrb[0].mxu0
        %1242 = vmatprep.mubr.bf16.mxu0 0
        %1243 = vmatmul.mubr.bf16.gmra.mrb[0].mxu0 %v1130
        %v1244 = vpop.f32.mrb[0].mxu0
        %v1245 = vadd.f32 %v1152, %v1244
        %v1246 = vpop.f32.mrb[0].mxu0
        %v1247 = vpop.f32.mrb[0].mxu0
        %v1248 = vadd.f32 %v1152, %v1247
        %v1249 = vpop.f32.mrb[0].mxu0
        %1250 = vmatprep.mubr.bf16.mxu0 0
        %1251 = vmatmul.mubr.bf16.gmra.mrb[0].mxu0 %v1131
        %v1252 = vpop.f32.mrb[0].mxu0
        %v1253 = vadd.f32 %v1152, %v1252
        %v1254 = vpop.f32.mrb[0].mxu0
        %v1255 = vpop.f32.mrb[0].mxu0
        %v1256 = vadd.f32 %v1152, %v1255
        %v1257 = vpop.f32.mrb[0].mxu0
        %1258 = vmatprep.mubr.bf16.mxu0 0
        %1259 = vmatmul.mubr.bf16.gmra.mrb[0].mxu0 %v1132
        %v1260 = vpop.f32.mrb[0].mxu0
        %v1261 = vadd.f32 %v1152, %v1260
        %v1262 = vpop.f32.mrb[0].mxu0
        %v1263 = vpop.f32.mrb[0].mxu0
        %v1264 = vadd.f32 %v1152, %v1263
        %v1265 = vpop.f32.mrb[0].mxu0
        %1266 = vmatprep.mubr.bf16.mxu0 0
        %1267 = vmatmul.mubr.bf16.gmra.mrb[0].mxu0 %v1133
        %v1268 = vpop.f32.mrb[0].mxu0
        %v1269 = vadd.f32 %v1152, %v1268
        %v1270 = vpop.f32.mrb[0].mxu0
        %v1271 = vpop.f32.mrb[0].mxu0
        %v1272 = vadd.f32 %v1152, %v1271
        %v1273 = vpop.f32.mrb[0].mxu0
        %1274 = vmatprep.mubr.bf16.mxu0 0
        %1275 = vmatmul.mubr.bf16.gmra.mrb[0].mxu0 %v1134
        %v1276 = vpop.f32.mrb[0].mxu0
        %v1277 = vadd.f32 %v1152, %v1276
        %v1278 = vpop.f32.mrb[0].mxu0
        %v1279 = vpop.f32.mrb[0].mxu0
        %v1280 = vadd.f32 %v1152, %v1279
        %v1281 = vpop.f32.mrb[0].mxu0
        %1282 = vmatprep.mubr.bf16.mxu0 0
        %1283 = vmatmul.mubr.bf16.gmra.mrb[0].mxu0 %v1135
        %v1284 = vpop.f32.mrb[0].mxu0
        %v1285 = vadd.f32 %v1152, %v1284
        %v1286 = vpop.f32.mrb[0].mxu0
        %v1287 = vpop.f32.mrb[0].mxu0
        %v1288 = vadd.f32 %v1152, %v1287
        %v1289 = vpop.f32.mrb[0].mxu0
        %1290 = vmatprep.mubr.bf16.mxu0 0
        %1291 = vmatmul.mubr.bf16.gmra.mrb[0].mxu0 %v1136
        %v1292 = vpop.f32.mrb[0].mxu0
        %v1293 = vadd.f32 %v1152, %v1292
        %v1294 = vpop.f32.mrb[0].mxu0
        %v1295 = vpop.f32.mrb[0].mxu0
        %v1296 = vadd.f32 %v1152, %v1295
        %v1297 = vpop.f32.mrb[0].mxu0
        %1298 = vmatprep.mubr.bf16.mxu0 0
        %1299 = vmatmul.mubr.bf16.gmra.mrb[0].mxu0 %v1137
        %v1300 = vpop.f32.mrb[0].mxu0
        %v1301 = vadd.f32 %v1152, %v1300
        %v1302 = vpop.f32.mrb[0].mxu0
        %v1303 = vpop.f32.mrb[0].mxu0
        %v1304 = vadd.f32 %v1152, %v1303
        %v1305 = vpop.f32.mrb[0].mxu0
        %1306 = vmatprep.mubr.bf16.mxu0 0
        %1307 = vmatmul.mubr.bf16.gmra.mrb[0].mxu0 %v1138
        %v1308 = vpop.f32.mrb[0].mxu0
        %v1309 = vadd.f32 %v1152, %v1308
        %v1310 = vpop.f32.mrb[0].mxu0
        %v1311 = vpop.f32.mrb[0].mxu0
        %v1312 = vadd.f32 %v1152, %v1311
        %v1313 = vpop.f32.mrb[0].mxu0
        %1314 = vdwg.mxu0
        %v1315 = vmax.f32 %v1189, 0.0
        %v1316 = vmax.f32 %v1192, 0.0
        %v1317 = vmax.f32 %v1197, 0.0
        %v1318 = vmax.f32 %v1200, 0.0
        %v1319 = vmax.f32 %v1205, 0.0
        %v1320 = vmax.f32 %v1208, 0.0
        %v1321 = vmax.f32 %v1213, 0.0
        %v1322 = vmax.f32 %v1216, 0.0
        %v1323 = vmax.f32 %v1221, 0.0
        %v1324 = vmax.f32 %v1224, 0.0
        %v1325 = vmax.f32 %v1229, 0.0
        %v1326 = vmax.f32 %v1232, 0.0
        %v1327 = vmax.f32 %v1237, 0.0
        %v1328 = vmax.f32 %v1240, 0.0
        %v1329 = vmax.f32 %v1245, 0.0
        %v1330 = vmax.f32 %v1248, 0.0
        %v1331 = vmax.f32 %v1253, 0.0
        %v1332 = vmax.f32 %v1256, 0.0
        %v1333 = vmax.f32 %v1261, 0.0
        %v1334 = vmax.f32 %v1264, 0.0
        %v1335 = vmax.f32 %v1269, 0.0
        %v1336 = vmax.f32 %v1272, 0.0
        %v1337 = vmax.f32 %v1277, 0.0
        %v1338 = vmax.f32 %v1280, 0.0
        %v1339 = vmax.f32 %v1285, 0.0
        %v1340 = vmax.f32 %v1288, 0.0
        %v1341 = vmax.f32 %v1293, 0.0
        %v1342 = vmax.f32 %v1296, 0.0
        %v1343 = vmax.f32 %v1301, 0.0
        %v1344 = vmax.f32 %v1304, 0.0
        %v1345 = vmax.f32 %v1309, 0.0
        %v1346 = vmax.f32 %v1312, 0.0
        %v1347 = vld [vmem:[#allocation11] sm:$0xff]
        %v1348 = vld [vmem:[#allocation11 + $0x8] sm:$0xff]
        %v1349 = vld [vmem:[#allocation11 + $0x10] sm:$0xff]
        %v1350 = vld [vmem:[#allocation11 + $0x18] sm:$0xff]
        %v1351 = vld [vmem:[#allocation11 + $0x20] sm:$0xff]
        %v1352 = vld [vmem:[#allocation11 + $0x28] sm:$0xff]
        %v1353 = vld [vmem:[#allocation11 + $0x30] sm:$0xff]
        %v1354 = vld [vmem:[#allocation11 + $0x38] sm:$0xff]
        %v1355 = vld [vmem:[#allocation11 + $0x40] sm:$0xff]
        %v1356 = vld [vmem:[#allocation11 + $0x48] sm:$0xff]
        %v1357 = vld [vmem:[#allocation11 + $0x50] sm:$0xff]
        %v1358 = vld [vmem:[#allocation11 + $0x58] sm:$0xff]
        %v1359 = vld [vmem:[#allocation11 + $0x60] sm:$0xff]
        %v1360 = vld [vmem:[#allocation11 + $0x68] sm:$0xff]
        %v1361 = vld [vmem:[#allocation11 + $0x70] sm:$0xff]
        %v1362 = vld [vmem:[#allocation11 + $0x78] sm:$0xff]
        %v1363 = vpack.c.bf16 %v1316, %v1315
        %v1364 = vpack.c.bf16 %v1318, %v1317
        %v1365 = vpack.c.bf16 %v1320, %v1319
        %v1366 = vpack.c.bf16 %v1322, %v1321
        %v1367 = vpack.c.bf16 %v1324, %v1323
        %v1368 = vpack.c.bf16 %v1326, %v1325
        %v1369 = vpack.c.bf16 %v1328, %v1327
        %v1370 = vpack.c.bf16 %v1330, %v1329
        %v1371 = vpack.c.bf16 %v1332, %v1331
        %v1372 = vpack.c.bf16 %v1334, %v1333
        %v1373 = vpack.c.bf16 %v1336, %v1335
        %v1374 = vpack.c.bf16 %v1338, %v1337
        %v1375 = vpack.c.bf16 %v1340, %v1339
        %v1376 = vpack.c.bf16 %v1342, %v1341
        %v1377 = vpack.c.bf16 %v1344, %v1343
        %v1378 = vpack.c.bf16 %v1346, %v1345
        %v1379 = vpack.c.bf16 %v1348, %v1347
        %v1380 = vpack.c.bf16 %v1350, %v1349
        %v1381 = vpack.c.bf16 %v1352, %v1351
        %v1382 = vpack.c.bf16 %v1354, %v1353
        %v1383 = vpack.c.bf16 %v1356, %v1355
        %v1384 = vpack.c.bf16 %v1358, %v1357
        %v1385 = vpack.c.bf16 %v1360, %v1359
        %v1386 = vpack.c.bf16 %v1362, %v1361
        %v1387 = vld [vmem:[%s9] sm:$0x1]
        %v1389 = vlaneseq
        %v1390 = vshrl.u32 %v1389, 7
        %v1391 = vsub.s32 0, %v1390
        %v1392 = vrot.slane %v1387, %v1391
        %1394 = vmatprep.subr.bf16.mxu0 0
        %1395 = vmatpush1.bf16.msra.mxu0 %v1379
        %1396 = vmatprep.subr.bf16.mxu0 0
        %1397 = vmatpush1.bf16.msra.mxu0 %v1380
        %1398 = vmatprep.subr.bf16.mxu0 0
        %1399 = vmatpush1.bf16.msra.mxu0 %v1381
        %1400 = vmatprep.subr.bf16.mxu0 0
        %1401 = vmatpush1.bf16.msra.mxu0 %v1382
        %1402 = vmatprep.subr.bf16.mxu0 0
        %1403 = vmatpush1.bf16.msra.mxu0 %v1383
        %1404 = vmatprep.subr.bf16.mxu0 0
        %1405 = vmatpush1.bf16.msra.mxu0 %v1384
        %1406 = vmatprep.subr.bf16.mxu0 0
        %1407 = vmatpush1.bf16.msra.mxu0 %v1385
        %1408 = vmatprep.subr.bf16.mxu0 0
        %1409 = vmatpush1.bf16.msra.mxu0 %v1386
        %1410 = vmatprep.subr.bf16.mxu0 0
        %1411 = vmatpush1.bf16.msra.mxu0 0
        %1412 = vmatprep.subr.bf16.mxu0 0
        %1413 = vmatpush1.bf16.msra.mxu0 0
        %1414 = vmatprep.subr.bf16.mxu0 0
        %1415 = vmatpush1.bf16.msra.mxu0 0
        %1416 = vmatprep.subr.bf16.mxu0 0
        %1417 = vmatpush1.bf16.msra.mxu0 0
        %1418 = vmatprep.subr.bf16.mxu0 0
        %1419 = vmatpush1.bf16.msra.mxu0 0
        %1420 = vmatprep.subr.bf16.mxu0 0
        %1421 = vmatpush1.bf16.msra.mxu0 0
        %1422 = vmatprep.subr.bf16.mxu0 0
        %1423 = vmatpush1.bf16.msra.mxu0 0
        %1424 = vmatprep.subr.bf16.mxu0 0
        %1425 = vmatpush1.bf16.msra.mxu0 0
        %1426 = vmatprep.mubr.bf16.mxu0 0
        %1427 = vmatmul.mubr.bf16.gmra.mrb[0].mxu0 %v1363
        %v1428 = vpop.f32.mrb[0].mxu0
        %v1429 = vadd.f32 %v1392, %v1428
        %v1430 = vpop.f32.mrb[0].mxu0
        %v1431 = vpop.f32.mrb[0].mxu0
        %v1432 = vadd.f32 %v1392, %v1431
        %v1433 = vpop.f32.mrb[0].mxu0
        %1434 = vmatprep.mubr.bf16.mxu0 0
        %1435 = vmatmul.mubr.bf16.gmra.mrb[0].mxu0 %v1364
        %v1436 = vpop.f32.mrb[0].mxu0
        %v1437 = vadd.f32 %v1392, %v1436
        %v1438 = vpop.f32.mrb[0].mxu0
        %v1439 = vpop.f32.mrb[0].mxu0
        %v1440 = vadd.f32 %v1392, %v1439
        %v1441 = vpop.f32.mrb[0].mxu0
        %1442 = vmatprep.mubr.bf16.mxu0 0
        %1443 = vmatmul.mubr.bf16.gmra.mrb[0].mxu0 %v1365
        %v1444 = vpop.f32.mrb[0].mxu0
        %v1445 = vadd.f32 %v1392, %v1444
        %v1446 = vpop.f32.mrb[0].mxu0
        %v1447 = vpop.f32.mrb[0].mxu0
        %v1448 = vadd.f32 %v1392, %v1447
        %v1449 = vpop.f32.mrb[0].mxu0
        %1450 = vmatprep.mubr.bf16.mxu0 0
        %1451 = vmatmul.mubr.bf16.gmra.mrb[0].mxu0 %v1366
        %v1452 = vpop.f32.mrb[0].mxu0
        %v1453 = vadd.f32 %v1392, %v1452
        %v1454 = vpop.f32.mrb[0].mxu0
        %v1455 = vpop.f32.mrb[0].mxu0
        %v1456 = vadd.f32 %v1392, %v1455
        %v1457 = vpop.f32.mrb[0].mxu0
        %1458 = vmatprep.mubr.bf16.mxu0 0
        %1459 = vmatmul.mubr.bf16.gmra.mrb[0].mxu0 %v1367
        %v1460 = vpop.f32.mrb[0].mxu0
        %v1461 = vadd.f32 %v1392, %v1460
        %v1462 = vpop.f32.mrb[0].mxu0
        %v1463 = vpop.f32.mrb[0].mxu0
        %v1464 = vadd.f32 %v1392, %v1463
        %v1465 = vpop.f32.mrb[0].mxu0
        %1466 = vmatprep.mubr.bf16.mxu0 0
        %1467 = vmatmul.mubr.bf16.gmra.mrb[0].mxu0 %v1368
        %v1468 = vpop.f32.mrb[0].mxu0
        %v1469 = vadd.f32 %v1392, %v1468
        %v1470 = vpop.f32.mrb[0].mxu0
        %v1471 = vpop.f32.mrb[0].mxu0
        %v1472 = vadd.f32 %v1392, %v1471
        %v1473 = vpop.f32.mrb[0].mxu0
        %1474 = vmatprep.mubr.bf16.mxu0 0
        %1475 = vmatmul.mubr.bf16.gmra.mrb[0].mxu0 %v1369
        %v1476 = vpop.f32.mrb[0].mxu0
        %v1477 = vadd.f32 %v1392, %v1476
        %v1478 = vpop.f32.mrb[0].mxu0
        %v1479 = vpop.f32.mrb[0].mxu0
        %v1480 = vadd.f32 %v1392, %v1479
        %v1481 = vpop.f32.mrb[0].mxu0
        %1482 = vmatprep.mubr.bf16.mxu0 0
        %1483 = vmatmul.mubr.bf16.gmra.mrb[0].mxu0 %v1370
        %v1484 = vpop.f32.mrb[0].mxu0
        %v1485 = vadd.f32 %v1392, %v1484
        %v1486 = vpop.f32.mrb[0].mxu0
        %v1487 = vpop.f32.mrb[0].mxu0
        %v1488 = vadd.f32 %v1392, %v1487
        %v1489 = vpop.f32.mrb[0].mxu0
        %1490 = vmatprep.mubr.bf16.mxu0 0
        %1491 = vmatmul.mubr.bf16.gmra.mrb[0].mxu0 %v1371
        %v1492 = vpop.f32.mrb[0].mxu0
        %v1493 = vadd.f32 %v1392, %v1492
        %v1494 = vpop.f32.mrb[0].mxu0
        %v1495 = vpop.f32.mrb[0].mxu0
        %v1496 = vadd.f32 %v1392, %v1495
        %v1497 = vpop.f32.mrb[0].mxu0
        %1498 = vmatprep.mubr.bf16.mxu0 0
        %1499 = vmatmul.mubr.bf16.gmra.mrb[0].mxu0 %v1372
        %v1500 = vpop.f32.mrb[0].mxu0
        %v1501 = vadd.f32 %v1392, %v1500
        %v1502 = vpop.f32.mrb[0].mxu0
        %v1503 = vpop.f32.mrb[0].mxu0
        %v1504 = vadd.f32 %v1392, %v1503
        %v1505 = vpop.f32.mrb[0].mxu0
        %1506 = vmatprep.mubr.bf16.mxu0 0
        %1507 = vmatmul.mubr.bf16.gmra.mrb[0].mxu0 %v1373
        %v1508 = vpop.f32.mrb[0].mxu0
        %v1509 = vadd.f32 %v1392, %v1508
        %v1510 = vpop.f32.mrb[0].mxu0
        %v1511 = vpop.f32.mrb[0].mxu0
        %v1512 = vadd.f32 %v1392, %v1511
        %v1513 = vpop.f32.mrb[0].mxu0
        %1514 = vmatprep.mubr.bf16.mxu0 0
        %1515 = vmatmul.mubr.bf16.gmra.mrb[0].mxu0 %v1374
        %v1516 = vpop.f32.mrb[0].mxu0
        %v1517 = vadd.f32 %v1392, %v1516
        %v1518 = vpop.f32.mrb[0].mxu0
        %v1519 = vpop.f32.mrb[0].mxu0
        %v1520 = vadd.f32 %v1392, %v1519
        %v1521 = vpop.f32.mrb[0].mxu0
        %1522 = vmatprep.mubr.bf16.mxu0 0
        %1523 = vmatmul.mubr.bf16.gmra.mrb[0].mxu0 %v1375
        %v1524 = vpop.f32.mrb[0].mxu0
        %v1525 = vadd.f32 %v1392, %v1524
        %v1526 = vpop.f32.mrb[0].mxu0
        %v1527 = vpop.f32.mrb[0].mxu0
        %v1528 = vadd.f32 %v1392, %v1527
        %v1529 = vpop.f32.mrb[0].mxu0
        %1530 = vmatprep.mubr.bf16.mxu0 0
        %1531 = vmatmul.mubr.bf16.gmra.mrb[0].mxu0 %v1376
        %v1532 = vpop.f32.mrb[0].mxu0
        %v1533 = vadd.f32 %v1392, %v1532
        %v1534 = vpop.f32.mrb[0].mxu0
        %v1535 = vpop.f32.mrb[0].mxu0
        %v1536 = vadd.f32 %v1392, %v1535
        %v1537 = vpop.f32.mrb[0].mxu0
        %1538 = vmatprep.mubr.bf16.mxu0 0
        %1539 = vmatmul.mubr.bf16.gmra.mrb[0].mxu0 %v1377
        %v1540 = vpop.f32.mrb[0].mxu0
        %v1541 = vadd.f32 %v1392, %v1540
        %v1542 = vpop.f32.mrb[0].mxu0
        %v1543 = vpop.f32.mrb[0].mxu0
        %v1544 = vadd.f32 %v1392, %v1543
        %v1545 = vpop.f32.mrb[0].mxu0
        %1546 = vmatprep.mubr.bf16.mxu0 0
        %1547 = vmatmul.mubr.bf16.gmra.mrb[0].mxu0 %v1378
        %v1548 = vpop.f32.mrb[0].mxu0
        %v1549 = vadd.f32 %v1392, %v1548
        %v1550 = vpop.f32.mrb[0].mxu0
        %v1551 = vpop.f32.mrb[0].mxu0
        %v1552 = vadd.f32 %v1392, %v1551
        %v1553 = vpop.f32.mrb[0].mxu0
        %1554 = vdwg.mxu0
        %v1555 = vmax.f32 %v1429, 0.0
        %v1556 = vmax.f32 %v1432, 0.0
        %v1557 = vmax.f32 %v1437, 0.0
        %v1558 = vmax.f32 %v1440, 0.0
        %v1559 = vmax.f32 %v1445, 0.0
        %v1560 = vmax.f32 %v1448, 0.0
        %v1561 = vmax.f32 %v1453, 0.0
        %v1562 = vmax.f32 %v1456, 0.0
        %v1563 = vmax.f32 %v1461, 0.0
        %v1564 = vmax.f32 %v1464, 0.0
        %v1565 = vmax.f32 %v1469, 0.0
        %v1566 = vmax.f32 %v1472, 0.0
        %v1567 = vmax.f32 %v1477, 0.0
        %v1568 = vmax.f32 %v1480, 0.0
        %v1569 = vmax.f32 %v1485, 0.0
        %v1570 = vmax.f32 %v1488, 0.0
        %v1571 = vmax.f32 %v1493, 0.0
        %v1572 = vmax.f32 %v1496, 0.0
        %v1573 = vmax.f32 %v1501, 0.0
        %v1574 = vmax.f32 %v1504, 0.0
        %v1575 = vmax.f32 %v1509, 0.0
        %v1576 = vmax.f32 %v1512, 0.0
        %v1577 = vmax.f32 %v1517, 0.0
        %v1578 = vmax.f32 %v1520, 0.0
        %v1579 = vmax.f32 %v1525, 0.0
        %v1580 = vmax.f32 %v1528, 0.0
        %v1581 = vmax.f32 %v1533, 0.0
        %v1582 = vmax.f32 %v1536, 0.0
        %v1583 = vmax.f32 %v1541, 0.0
        %v1584 = vmax.f32 %v1544, 0.0
        %v1585 = vmax.f32 %v1549, 0.0
        %v1586 = vmax.f32 %v1552, 0.0
        %v1587 = vld [vmem:[#allocation13] sm:$0xff]
        %v1588 = vld [vmem:[#allocation13 + $0x8] sm:$0xff]
        %v1589 = vld [vmem:[#allocation13 + $0x10] sm:$0xff]
        %v1590 = vld [vmem:[#allocation13 + $0x18] sm:$0xff]
        %v1591 = vld [vmem:[#allocation13 + $0x20] sm:$0xff]
        %v1592 = vld [vmem:[#allocation13 + $0x28] sm:$0xff]
        %v1593 = vld [vmem:[#allocation13 + $0x30] sm:$0xff]
        %v1594 = vld [vmem:[#allocation13 + $0x38] sm:$0xff]
        %v1595 = vld [vmem:[#allocation13 + $0x40] sm:$0xff]
        %v1596 = vld [vmem:[#allocation13 + $0x48] sm:$0xff]
        %v1597 = vld [vmem:[#allocation13 + $0x50] sm:$0xff]
        %v1598 = vld [vmem:[#allocation13 + $0x58] sm:$0xff]
        %v1599 = vld [vmem:[#allocation13 + $0x60] sm:$0xff]
        %v1600 = vld [vmem:[#allocation13 + $0x68] sm:$0xff]
        %v1601 = vld [vmem:[#allocation13 + $0x70] sm:$0xff]
        %v1602 = vld [vmem:[#allocation13 + $0x78] sm:$0xff]
        %v1603 = vpack.c.bf16 %v1044, %v1043
        %v1604 = vpack.c.bf16 %v1046, %v1045
        %v1605 = vpack.c.bf16 %v1048, %v1047
        %v1606 = vpack.c.bf16 %v1050, %v1049
        %v1607 = vpack.c.bf16 %v1052, %v1051
        %v1608 = vpack.c.bf16 %v1054, %v1053
        %v1609 = vpack.c.bf16 %v1056, %v1055
        %v1610 = vpack.c.bf16 %v1058, %v1057
        %v1611 = vpack.c.bf16 %v1060, %v1059
        %v1612 = vpack.c.bf16 %v1062, %v1061
        %v1613 = vpack.c.bf16 %v1064, %v1063
        %v1614 = vpack.c.bf16 %v1066, %v1065
        %v1615 = vpack.c.bf16 %v1068, %v1067
        %v1616 = vpack.c.bf16 %v1070, %v1069
        %v1617 = vpack.c.bf16 %v1072, %v1071
        %v1618 = vpack.c.bf16 %v1074, %v1073
        %v1619 = vpack.c.bf16 %v1588, %v1587
        %v1620 = vpack.c.bf16 %v1590, %v1589
        %v1621 = vpack.c.bf16 %v1592, %v1591
        %v1622 = vpack.c.bf16 %v1594, %v1593
        %v1623 = vpack.c.bf16 %v1596, %v1595
        %v1624 = vpack.c.bf16 %v1598, %v1597
        %v1625 = vpack.c.bf16 %v1600, %v1599
        %v1626 = vpack.c.bf16 %v1602, %v1601
        %v1627 = vld [vmem:[#allocation14] sm:$0xff]
        %v1628 = vld [vmem:[#allocation14 + $0x8] sm:$0xff]
        %v1629 = vld [vmem:[#allocation14 + $0x10] sm:$0xff]
        %v1630 = vld [vmem:[#allocation14 + $0x18] sm:$0xff]
        %v1631 = vld [vmem:[#allocation14 + $0x20] sm:$0xff]
        %v1632 = vld [vmem:[#allocation14 + $0x28] sm:$0xff]
        %v1633 = vld [vmem:[#allocation14 + $0x30] sm:$0xff]
        %v1634 = vld [vmem:[#allocation14 + $0x38] sm:$0xff]
        %v1635 = vld [vmem:[#allocation14 + $0x40] sm:$0xff]
        %v1636 = vld [vmem:[#allocation14 + $0x48] sm:$0xff]
        %v1637 = vld [vmem:[#allocation14 + $0x50] sm:$0xff]
        %v1638 = vld [vmem:[#allocation14 + $0x58] sm:$0xff]
        %v1639 = vld [vmem:[#allocation14 + $0x60] sm:$0xff]
        %v1640 = vld [vmem:[#allocation14 + $0x68] sm:$0xff]
        %v1641 = vld [vmem:[#allocation14 + $0x70] sm:$0xff]
        %v1642 = vld [vmem:[#allocation14 + $0x78] sm:$0xff]
        %v1643 = vpack.c.bf16 %v1556, %v1555
        %v1644 = vpack.c.bf16 %v1558, %v1557
        %v1645 = vpack.c.bf16 %v1560, %v1559
        %v1646 = vpack.c.bf16 %v1562, %v1561
        %v1647 = vpack.c.bf16 %v1564, %v1563
        %v1648 = vpack.c.bf16 %v1566, %v1565
        %v1649 = vpack.c.bf16 %v1568, %v1567
        %v1650 = vpack.c.bf16 %v1570, %v1569
        %v1651 = vpack.c.bf16 %v1572, %v1571
        %v1652 = vpack.c.bf16 %v1574, %v1573
        %v1653 = vpack.c.bf16 %v1576, %v1575
        %v1654 = vpack.c.bf16 %v1578, %v1577
        %v1655 = vpack.c.bf16 %v1580, %v1579
        %v1656 = vpack.c.bf16 %v1582, %v1581
        %v1657 = vpack.c.bf16 %v1584, %v1583
        %v1658 = vpack.c.bf16 %v1586, %v1585
        %v1659 = vpack.c.bf16 %v1628, %v1627
        %v1660 = vpack.c.bf16 %v1630, %v1629
        %v1661 = vpack.c.bf16 %v1632, %v1631
        %v1662 = vpack.c.bf16 %v1634, %v1633
        %v1663 = vpack.c.bf16 %v1636, %v1635
        %v1664 = vpack.c.bf16 %v1638, %v1637
        %v1665 = vpack.c.bf16 %v1640, %v1639
        %v1666 = vpack.c.bf16 %v1642, %v1641
        %1667 = vmatprep.subr.bf16.mxu0 0
        %1668 = vmatpush1.bf16.msra.mxu0 %v1659
        %1669 = vmatprep.subr.bf16.mxu0 0
        %1670 = vmatpush1.bf16.msra.mxu0 %v1660
        %1671 = vmatprep.subr.bf16.mxu0 0
        %1672 = vmatpush1.bf16.msra.mxu0 %v1661
        %1673 = vmatprep.subr.bf16.mxu0 0
        %1674 = vmatpush1.bf16.msra.mxu0 %v1662
        %1675 = vmatprep.subr.bf16.mxu0 0
        %1676 = vmatpush1.bf16.msra.mxu0 %v1663
        %1677 = vmatprep.subr.bf16.mxu0 0
        %1678 = vmatpush1.bf16.msra.mxu0 %v1664
        %1679 = vmatprep.subr.bf16.mxu0 0
        %1680 = vmatpush1.bf16.msra.mxu0 %v1665
        %1681 = vmatprep.subr.bf16.mxu0 0
        %1682 = vmatpush1.bf16.msra.mxu0 %v1666
        %1683 = vmatprep.subr.bf16.mxu0 0
        %1684 = vmatpush1.bf16.msra.mxu0 0
        %1685 = vmatprep.subr.bf16.mxu0 0
        %1686 = vmatpush1.bf16.msra.mxu0 0
        %1687 = vmatprep.subr.bf16.mxu0 0
        %1688 = vmatpush1.bf16.msra.mxu0 0
        %1689 = vmatprep.subr.bf16.mxu0 0
        %1690 = vmatpush1.bf16.msra.mxu0 0
        %1691 = vmatprep.subr.bf16.mxu0 0
        %1692 = vmatpush1.bf16.msra.mxu0 0
        %1693 = vmatprep.subr.bf16.mxu0 0
        %1694 = vmatpush1.bf16.msra.mxu0 0
        %1695 = vmatprep.subr.bf16.mxu0 0
        %1696 = vmatpush1.bf16.msra.mxu0 0
        %1697 = vmatprep.subr.bf16.mxu0 0
        %1698 = vmatpush1.bf16.msra.mxu0 0
        %1699 = vmatprep.mubr.bf16.mxu0 0
        %1700 = vmatmul.mubr.bf16.gmra.mrb[0].mxu0 %v1643
        %v1701 = vpop.f32.mrb[0].mxu0
        %v1702 = vadd.f32 0.0, %v1701
        %v1703 = vpop.f32.mrb[0].mxu0
        %v1704 = vpop.f32.mrb[0].mxu0
        %v1705 = vadd.f32 0.0, %v1704
        %v1706 = vpop.f32.mrb[0].mxu0
        %1707 = vmatprep.mubr.bf16.mxu0 0
        %1708 = vmatmul.mubr.bf16.gmra.mrb[0].mxu0 %v1644
        %v1709 = vpop.f32.mrb[0].mxu0
        %v1710 = vadd.f32 0.0, %v1709
        %v1711 = vpop.f32.mrb[0].mxu0
        %v1712 = vpop.f32.mrb[0].mxu0
        %v1713 = vadd.f32 0.0, %v1712
        %v1714 = vpop.f32.mrb[0].mxu0
        %1715 = vmatprep.mubr.bf16.mxu0 0
        %1716 = vmatmul.mubr.bf16.gmra.mrb[0].mxu0 %v1645
        %v1717 = vpop.f32.mrb[0].mxu0
        %v1718 = vadd.f32 0.0, %v1717
        %v1719 = vpop.f32.mrb[0].mxu0
        %v1720 = vpop.f32.mrb[0].mxu0
        %v1721 = vadd.f32 0.0, %v1720
        %v1722 = vpop.f32.mrb[0].mxu0
        %1723 = vmatprep.mubr.bf16.mxu0 0
        %1724 = vmatmul.mubr.bf16.gmra.mrb[0].mxu0 %v1646
        %v1725 = vpop.f32.mrb[0].mxu0
        %v1726 = vadd.f32 0.0, %v1725
        %v1727 = vpop.f32.mrb[0].mxu0
        %v1728 = vpop.f32.mrb[0].mxu0
        %v1729 = vadd.f32 0.0, %v1728
        %v1730 = vpop.f32.mrb[0].mxu0
        %1731 = vmatprep.mubr.bf16.mxu0 0
        %1732 = vmatmul.mubr.bf16.gmra.mrb[0].mxu0 %v1647
        %v1733 = vpop.f32.mrb[0].mxu0
        %v1734 = vadd.f32 0.0, %v1733
        %v1735 = vpop.f32.mrb[0].mxu0
        %v1736 = vpop.f32.mrb[0].mxu0
        %v1737 = vadd.f32 0.0, %v1736
        %v1738 = vpop.f32.mrb[0].mxu0
        %1739 = vmatprep.mubr.bf16.mxu0 0
        %1740 = vmatmul.mubr.bf16.gmra.mrb[0].mxu0 %v1648
        %v1741 = vpop.f32.mrb[0].mxu0
        %v1742 = vadd.f32 0.0, %v1741
        %v1743 = vpop.f32.mrb[0].mxu0
        %v1744 = vpop.f32.mrb[0].mxu0
        %v1745 = vadd.f32 0.0, %v1744
        %v1746 = vpop.f32.mrb[0].mxu0
        %1747 = vmatprep.mubr.bf16.mxu0 0
        %1748 = vmatmul.mubr.bf16.gmra.mrb[0].mxu0 %v1649
        %v1749 = vpop.f32.mrb[0].mxu0
        %v1750 = vadd.f32 0.0, %v1749
        %v1751 = vpop.f32.mrb[0].mxu0
        %v1752 = vpop.f32.mrb[0].mxu0
        %v1753 = vadd.f32 0.0, %v1752
        %v1754 = vpop.f32.mrb[0].mxu0
        %1755 = vmatprep.mubr.bf16.mxu0 0
        %1756 = vmatmul.mubr.bf16.gmra.mrb[0].mxu0 %v1650
        %v1757 = vpop.f32.mrb[0].mxu0
        %v1758 = vadd.f32 0.0, %v1757
        %v1759 = vpop.f32.mrb[0].mxu0
        %v1760 = vpop.f32.mrb[0].mxu0
        %v1761 = vadd.f32 0.0, %v1760
        %v1762 = vpop.f32.mrb[0].mxu0
        %1763 = vmatprep.mubr.bf16.mxu0 0
        %1764 = vmatmul.mubr.bf16.gmra.mrb[0].mxu0 %v1651
        %v1765 = vpop.f32.mrb[0].mxu0
        %v1766 = vadd.f32 0.0, %v1765
        %v1767 = vpop.f32.mrb[0].mxu0
        %v1768 = vpop.f32.mrb[0].mxu0
        %v1769 = vadd.f32 0.0, %v1768
        %v1770 = vpop.f32.mrb[0].mxu0
        %1771 = vmatprep.mubr.bf16.mxu0 0
        %1772 = vmatmul.mubr.bf16.gmra.mrb[0].mxu0 %v1652
        %v1773 = vpop.f32.mrb[0].mxu0
        %v1774 = vadd.f32 0.0, %v1773
        %v1775 = vpop.f32.mrb[0].mxu0
        %v1776 = vpop.f32.mrb[0].mxu0
        %v1777 = vadd.f32 0.0, %v1776
        %v1778 = vpop.f32.mrb[0].mxu0
        %1779 = vmatprep.mubr.bf16.mxu0 0
        %1780 = vmatmul.mubr.bf16.gmra.mrb[0].mxu0 %v1653
        %v1781 = vpop.f32.mrb[0].mxu0
        %v1782 = vadd.f32 0.0, %v1781
        %v1783 = vpop.f32.mrb[0].mxu0
        %v1784 = vpop.f32.mrb[0].mxu0
        %v1785 = vadd.f32 0.0, %v1784
        %v1786 = vpop.f32.mrb[0].mxu0
        %1787 = vmatprep.mubr.bf16.mxu0 0
        %1788 = vmatmul.mubr.bf16.gmra.mrb[0].mxu0 %v1654
        %v1789 = vpop.f32.mrb[0].mxu0
        %v1790 = vadd.f32 0.0, %v1789
        %v1791 = vpop.f32.mrb[0].mxu0
        %v1792 = vpop.f32.mrb[0].mxu0
        %v1793 = vadd.f32 0.0, %v1792
        %v1794 = vpop.f32.mrb[0].mxu0
        %1795 = vmatprep.mubr.bf16.mxu0 0
        %1796 = vmatmul.mubr.bf16.gmra.mrb[0].mxu0 %v1655
        %v1797 = vpop.f32.mrb[0].mxu0
        %v1798 = vadd.f32 0.0, %v1797
        %v1799 = vpop.f32.mrb[0].mxu0
        %v1800 = vpop.f32.mrb[0].mxu0
        %v1801 = vadd.f32 0.0, %v1800
        %v1802 = vpop.f32.mrb[0].mxu0
        %1803 = vmatprep.mubr.bf16.mxu0 0
        %1804 = vmatmul.mubr.bf16.gmra.mrb[0].mxu0 %v1656
        %v1805 = vpop.f32.mrb[0].mxu0
        %v1806 = vadd.f32 0.0, %v1805
        %v1807 = vpop.f32.mrb[0].mxu0
        %v1808 = vpop.f32.mrb[0].mxu0
        %v1809 = vadd.f32 0.0, %v1808
        %v1810 = vpop.f32.mrb[0].mxu0
        %1811 = vmatprep.mubr.bf16.mxu0 0
        %1812 = vmatmul.mubr.bf16.gmra.mrb[0].mxu0 %v1657
        %v1813 = vpop.f32.mrb[0].mxu0
        %v1814 = vadd.f32 0.0, %v1813
        %v1815 = vpop.f32.mrb[0].mxu0
        %v1816 = vpop.f32.mrb[0].mxu0
        %v1817 = vadd.f32 0.0, %v1816
        %v1818 = vpop.f32.mrb[0].mxu0
        %1819 = vmatprep.mubr.bf16.mxu0 0
        %1820 = vmatmul.mubr.bf16.gmra.mrb[0].mxu0 %v1658
        %v1821 = vpop.f32.mrb[0].mxu0
        %v1822 = vadd.f32 0.0, %v1821
        %v1823 = vpop.f32.mrb[0].mxu0
        %v1824 = vpop.f32.mrb[0].mxu0
        %v1825 = vadd.f32 0.0, %v1824
        %v1826 = vpop.f32.mrb[0].mxu0
        %1827 = vdwg.mxu0
        %1828 = vmatprep.subr.bf16.mxu0 0
        %1829 = vmatpush1.bf16.msra.mxu0 %v1619
        %1830 = vmatprep.subr.bf16.mxu0 0
        %1831 = vmatpush1.bf16.msra.mxu0 %v1620
        %1832 = vmatprep.subr.bf16.mxu0 0
        %1833 = vmatpush1.bf16.msra.mxu0 %v1621
        %1834 = vmatprep.subr.bf16.mxu0 0
        %1835 = vmatpush1.bf16.msra.mxu0 %v1622
        %1836 = vmatprep.subr.bf16.mxu0 0
        %1837 = vmatpush1.bf16.msra.mxu0 %v1623
        %1838 = vmatprep.subr.bf16.mxu0 0
        %1839 = vmatpush1.bf16.msra.mxu0 %v1624
        %1840 = vmatprep.subr.bf16.mxu0 0
        %1841 = vmatpush1.bf16.msra.mxu0 %v1625
        %1842 = vmatprep.subr.bf16.mxu0 0
        %1843 = vmatpush1.bf16.msra.mxu0 %v1626
        %1844 = vmatprep.subr.bf16.mxu0 0
        %1845 = vmatpush1.bf16.msra.mxu0 0
        %1846 = vmatprep.subr.bf16.mxu0 0
        %1847 = vmatpush1.bf16.msra.mxu0 0
        %1848 = vmatprep.subr.bf16.mxu0 0
        %1849 = vmatpush1.bf16.msra.mxu0 0
        %1850 = vmatprep.subr.bf16.mxu0 0
        %1851 = vmatpush1.bf16.msra.mxu0 0
        %1852 = vmatprep.subr.bf16.mxu0 0
        %1853 = vmatpush1.bf16.msra.mxu0 0
        %1854 = vmatprep.subr.bf16.mxu0 0
        %1855 = vmatpush1.bf16.msra.mxu0 0
        %1856 = vmatprep.subr.bf16.mxu0 0
        %1857 = vmatpush1.bf16.msra.mxu0 0
        %1858 = vmatprep.subr.bf16.mxu0 0
        %1859 = vmatpush1.bf16.msra.mxu0 0
        %1860 = vmatprep.mubr.bf16.mxu0 0
        %1861 = vmatmul.mubr.bf16.gmra.mrb[0].mxu0 %v1603
        %v1862 = vpop.f32.mrb[0].mxu0
        %v1863 = vadd.f32 %v1702, %v1862
        %v1864 = vpop.f32.mrb[0].mxu0
        %v1865 = vpop.f32.mrb[0].mxu0
        %v1866 = vadd.f32 %v1705, %v1865
        %v1867 = vpop.f32.mrb[0].mxu0
        %1868 = vmatprep.mubr.bf16.mxu0 0
        %1869 = vmatmul.mubr.bf16.gmra.mrb[0].mxu0 %v1604
        %v1870 = vpop.f32.mrb[0].mxu0
        %v1871 = vadd.f32 %v1710, %v1870
        %v1872 = vpop.f32.mrb[0].mxu0
        %v1873 = vpop.f32.mrb[0].mxu0
        %v1874 = vadd.f32 %v1713, %v1873
        %v1875 = vpop.f32.mrb[0].mxu0
        %1876 = vmatprep.mubr.bf16.mxu0 0
        %1877 = vmatmul.mubr.bf16.gmra.mrb[0].mxu0 %v1605
        %v1878 = vpop.f32.mrb[0].mxu0
        %v1879 = vadd.f32 %v1718, %v1878
        %v1880 = vpop.f32.mrb[0].mxu0
        %v1881 = vpop.f32.mrb[0].mxu0
        %v1882 = vadd.f32 %v1721, %v1881
        %v1883 = vpop.f32.mrb[0].mxu0
        %1884 = vmatprep.mubr.bf16.mxu0 0
        %1885 = vmatmul.mubr.bf16.gmra.mrb[0].mxu0 %v1606
        %v1886 = vpop.f32.mrb[0].mxu0
        %v1887 = vadd.f32 %v1726, %v1886
        %v1888 = vpop.f32.mrb[0].mxu0
        %v1889 = vpop.f32.mrb[0].mxu0
        %v1890 = vadd.f32 %v1729, %v1889
        %v1891 = vpop.f32.mrb[0].mxu0
        %1892 = vmatprep.mubr.bf16.mxu0 0
        %1893 = vmatmul.mubr.bf16.gmra.mrb[0].mxu0 %v1607
        %v1894 = vpop.f32.mrb[0].mxu0
        %v1895 = vadd.f32 %v1734, %v1894
        %v1896 = vpop.f32.mrb[0].mxu0
        %v1897 = vpop.f32.mrb[0].mxu0
        %v1898 = vadd.f32 %v1737, %v1897
        %v1899 = vpop.f32.mrb[0].mxu0
        %1900 = vmatprep.mubr.bf16.mxu0 0
        %1901 = vmatmul.mubr.bf16.gmra.mrb[0].mxu0 %v1608
        %v1902 = vpop.f32.mrb[0].mxu0
        %v1903 = vadd.f32 %v1742, %v1902
        %v1904 = vpop.f32.mrb[0].mxu0
        %v1905 = vpop.f32.mrb[0].mxu0
        %v1906 = vadd.f32 %v1745, %v1905
        %v1907 = vpop.f32.mrb[0].mxu0
        %1908 = vmatprep.mubr.bf16.mxu0 0
        %1909 = vmatmul.mubr.bf16.gmra.mrb[0].mxu0 %v1609
        %v1910 = vpop.f32.mrb[0].mxu0
        %v1911 = vadd.f32 %v1750, %v1910
        %v1912 = vpop.f32.mrb[0].mxu0
        %v1913 = vpop.f32.mrb[0].mxu0
        %v1914 = vadd.f32 %v1753, %v1913
        %v1915 = vpop.f32.mrb[0].mxu0
        %1916 = vmatprep.mubr.bf16.mxu0 0
        %1917 = vmatmul.mubr.bf16.gmra.mrb[0].mxu0 %v1610
        %v1918 = vpop.f32.mrb[0].mxu0
        %v1919 = vadd.f32 %v1758, %v1918
        %v1920 = vpop.f32.mrb[0].mxu0
        %v1921 = vpop.f32.mrb[0].mxu0
        %v1922 = vadd.f32 %v1761, %v1921
        %v1923 = vpop.f32.mrb[0].mxu0
        %1924 = vmatprep.mubr.bf16.mxu0 0
        %1925 = vmatmul.mubr.bf16.gmra.mrb[0].mxu0 %v1611
        %v1926 = vpop.f32.mrb[0].mxu0
        %v1927 = vadd.f32 %v1766, %v1926
        %v1928 = vpop.f32.mrb[0].mxu0
        %v1929 = vpop.f32.mrb[0].mxu0
        %v1930 = vadd.f32 %v1769, %v1929
        %v1931 = vpop.f32.mrb[0].mxu0
        %1932 = vmatprep.mubr.bf16.mxu0 0
        %1933 = vmatmul.mubr.bf16.gmra.mrb[0].mxu0 %v1612
        %v1934 = vpop.f32.mrb[0].mxu0
        %v1935 = vadd.f32 %v1774, %v1934
        %v1936 = vpop.f32.mrb[0].mxu0
        %v1937 = vpop.f32.mrb[0].mxu0
        %v1938 = vadd.f32 %v1777, %v1937
        %v1939 = vpop.f32.mrb[0].mxu0
        %1940 = vmatprep.mubr.bf16.mxu0 0
        %1941 = vmatmul.mubr.bf16.gmra.mrb[0].mxu0 %v1613
        %v1942 = vpop.f32.mrb[0].mxu0
        %v1943 = vadd.f32 %v1782, %v1942
        %v1944 = vpop.f32.mrb[0].mxu0
        %v1945 = vpop.f32.mrb[0].mxu0
        %v1946 = vadd.f32 %v1785, %v1945
        %v1947 = vpop.f32.mrb[0].mxu0
        %1948 = vmatprep.mubr.bf16.mxu0 0
        %1949 = vmatmul.mubr.bf16.gmra.mrb[0].mxu0 %v1614
        %v1950 = vpop.f32.mrb[0].mxu0
        %v1951 = vadd.f32 %v1790, %v1950
        %v1952 = vpop.f32.mrb[0].mxu0
        %v1953 = vpop.f32.mrb[0].mxu0
        %v1954 = vadd.f32 %v1793, %v1953
        %v1955 = vpop.f32.mrb[0].mxu0
        %1956 = vmatprep.mubr.bf16.mxu0 0
        %1957 = vmatmul.mubr.bf16.gmra.mrb[0].mxu0 %v1615
        %v1958 = vpop.f32.mrb[0].mxu0
        %v1959 = vadd.f32 %v1798, %v1958
        %v1960 = vpop.f32.mrb[0].mxu0
        %v1961 = vpop.f32.mrb[0].mxu0
        %v1962 = vadd.f32 %v1801, %v1961
        %v1963 = vpop.f32.mrb[0].mxu0
        %1964 = vmatprep.mubr.bf16.mxu0 0
        %1965 = vmatmul.mubr.bf16.gmra.mrb[0].mxu0 %v1616
        %v1966 = vpop.f32.mrb[0].mxu0
        %v1967 = vadd.f32 %v1806, %v1966
        %v1968 = vpop.f32.mrb[0].mxu0
        %v1969 = vpop.f32.mrb[0].mxu0
        %v1970 = vadd.f32 %v1809, %v1969
        %v1971 = vpop.f32.mrb[0].mxu0
        %1972 = vmatprep.mubr.bf16.mxu0 0
        %1973 = vmatmul.mubr.bf16.gmra.mrb[0].mxu0 %v1617
        %v1974 = vpop.f32.mrb[0].mxu0
        %v1975 = vadd.f32 %v1814, %v1974
        %v1976 = vpop.f32.mrb[0].mxu0
        %v1977 = vpop.f32.mrb[0].mxu0
        %v1978 = vadd.f32 %v1817, %v1977
        %v1979 = vpop.f32.mrb[0].mxu0
        %1980 = vmatprep.mubr.bf16.mxu0 0
        %1981 = vmatmul.mubr.bf16.gmra.mrb[0].mxu0 %v1618
        %v1982 = vpop.f32.mrb[0].mxu0
        %v1983 = vadd.f32 %v1822, %v1982
        %v1984 = vpop.f32.mrb[0].mxu0
        %v1985 = vpop.f32.mrb[0].mxu0
        %v1986 = vadd.f32 %v1825, %v1985
        %v1987 = vpop.f32.mrb[0].mxu0
        %1988 = vdwg.mxu0
        %v1989 = vpack.c.bf16 %v1866, %v1863
        %v1990 = vpack.c.bf16 %v1874, %v1871
        %v1991 = vpack.c.bf16 %v1882, %v1879
        %v1992 = vpack.c.bf16 %v1890, %v1887
        %v1993 = vpack.c.bf16 %v1898, %v1895
        %v1994 = vpack.c.bf16 %v1906, %v1903
        %v1995 = vpack.c.bf16 %v1914, %v1911
        %v1996 = vpack.c.bf16 %v1922, %v1919
        %v1997 = vpack.c.bf16 %v1930, %v1927
        %v1998 = vpack.c.bf16 %v1938, %v1935
        %v1999 = vpack.c.bf16 %v1946, %v1943
        %v2000 = vpack.c.bf16 %v1954, %v1951
        %v2001 = vpack.c.bf16 %v1962, %v1959
        %v2002 = vpack.c.bf16 %v1970, %v1967
        %v2003 = vpack.c.bf16 %v1978, %v1975
        %v2004 = vpack.c.bf16 %v1986, %v1983
        %v2021 = vunpack.c.l.b16 %v1989
        %v2022 = vunpack.c.h.b16 %v1989
        %v2023 = vunpack.c.l.b16 %v1990
        %v2024 = vunpack.c.h.b16 %v1990
        %v2025 = vunpack.c.l.b16 %v1991
        %v2026 = vunpack.c.h.b16 %v1991
        %v2027 = vunpack.c.l.b16 %v1992
        %v2028 = vunpack.c.h.b16 %v1992
        %v2029 = vunpack.c.l.b16 %v1993
        %v2030 = vunpack.c.h.b16 %v1993
        %v2031 = vunpack.c.l.b16 %v1994
        %v2032 = vunpack.c.h.b16 %v1994
        %v2033 = vunpack.c.l.b16 %v1995
        %v2034 = vunpack.c.h.b16 %v1995
        %v2035 = vunpack.c.l.b16 %v1996
        %v2036 = vunpack.c.h.b16 %v1996
        %v2037 = vunpack.c.l.b16 %v1997
        %v2038 = vunpack.c.h.b16 %v1997
        %v2039 = vunpack.c.l.b16 %v1998
        %v2040 = vunpack.c.h.b16 %v1998
        %v2041 = vunpack.c.l.b16 %v1999
        %v2042 = vunpack.c.h.b16 %v1999
        %v2043 = vunpack.c.l.b16 %v2000
        %v2044 = vunpack.c.h.b16 %v2000
        %v2045 = vunpack.c.l.b16 %v2001
        %v2046 = vunpack.c.h.b16 %v2001
        %v2047 = vunpack.c.l.b16 %v2002
        %v2048 = vunpack.c.h.b16 %v2002
        %v2049 = vunpack.c.l.b16 %v2003
        %v2050 = vunpack.c.h.b16 %v2003
        %v2051 = vunpack.c.l.b16 %v2004
        %v2052 = vunpack.c.h.b16 %v2004
        %v2053 = vpack.c.b16 %v2021, %v2021
        %v2054 = vpack.c.b16 %v2022, %v2022
        %v2055 = vpack.c.b16 %v2023, %v2023
        %v2056 = vpack.c.b16 %v2024, %v2024
        %v2057 = vpack.c.b16 %v2025, %v2025
        %v2058 = vpack.c.b16 %v2026, %v2026
        %v2059 = vpack.c.b16 %v2027, %v2027
        %v2060 = vpack.c.b16 %v2028, %v2028
        %v2061 = vpack.c.b16 %v2029, %v2029
        %v2062 = vpack.c.b16 %v2030, %v2030
        %v2063 = vpack.c.b16 %v2031, %v2031
        %v2064 = vpack.c.b16 %v2032, %v2032
        %v2065 = vpack.c.b16 %v2033, %v2033
        %v2066 = vpack.c.b16 %v2034, %v2034
        %v2067 = vpack.c.b16 %v2035, %v2035
        %v2068 = vpack.c.b16 %v2036, %v2036
        %v2069 = vpack.c.b16 %v2037, %v2037
        %v2070 = vpack.c.b16 %v2038, %v2038
        %v2071 = vpack.c.b16 %v2039, %v2039
        %v2072 = vpack.c.b16 %v2040, %v2040
        %v2073 = vpack.c.b16 %v2041, %v2041
        %v2074 = vpack.c.b16 %v2042, %v2042
        %v2075 = vpack.c.b16 %v2043, %v2043
        %v2076 = vpack.c.b16 %v2044, %v2044
        %v2077 = vpack.c.b16 %v2045, %v2045
        %v2078 = vpack.c.b16 %v2046, %v2046
        %v2079 = vpack.c.b16 %v2047, %v2047
        %v2080 = vpack.c.b16 %v2048, %v2048
        %v2081 = vpack.c.b16 %v2049, %v2049
        %v2082 = vpack.c.b16 %v2050, %v2050
        %v2083 = vpack.c.b16 %v2051, %v2051
        %v2084 = vpack.c.b16 %v2052, %v2052
        %2117 = vst [vmem:[%s558] sm:$0xf] %v2053
        %2118 = vst [vmem:[%s558 + $0x4] sm:$0xf] %v2054
        %2119 = vst [vmem:[%s558 + $0x8] sm:$0xf] %v2055
        %2120 = vst [vmem:[%s558 + $0xc] sm:$0xf] %v2056
        %2121 = vst [vmem:[%s558 + $0x10] sm:$0xf] %v2057
        %2122 = vst [vmem:[%s558 + $0x14] sm:$0xf] %v2058
        %2123 = vst [vmem:[%s558 + $0x18] sm:$0xf] %v2059
        %2124 = vst [vmem:[%s558 + $0x1c] sm:$0xf] %v2060
        %2125 = vst [vmem:[%s558 + $0x20] sm:$0xf] %v2061
        %2126 = vst [vmem:[%s558 + $0x24] sm:$0xf] %v2062
        %2127 = vst [vmem:[%s558 + $0x28] sm:$0xf] %v2063
        %2128 = vst [vmem:[%s558 + $0x2c] sm:$0xf] %v2064
        %2129 = vst [vmem:[%s558 + $0x30] sm:$0xf] %v2065
        %2130 = vst [vmem:[%s558 + $0x34] sm:$0xf] %v2066
        %2131 = vst [vmem:[%s558 + $0x38] sm:$0xf] %v2067
        %2132 = vst [vmem:[%s558 + $0x3c] sm:$0xf] %v2068
        %2133 = vst [vmem:[%s558 + $0x40] sm:$0xf] %v2069
        %2134 = vst [vmem:[%s558 + $0x44] sm:$0xf] %v2070
        %2135 = vst [vmem:[%s558 + $0x48] sm:$0xf] %v2071
        %2136 = vst [vmem:[%s558 + $0x4c] sm:$0xf] %v2072
        %2137 = vst [vmem:[%s558 + $0x50] sm:$0xf] %v2073
        %2138 = vst [vmem:[%s558 + $0x54] sm:$0xf] %v2074
        %2139 = vst [vmem:[%s558 + $0x58] sm:$0xf] %v2075
        %2140 = vst [vmem:[%s558 + $0x5c] sm:$0xf] %v2076
        %2141 = vst [vmem:[%s558 + $0x60] sm:$0xf] %v2077
        %2142 = vst [vmem:[%s558 + $0x64] sm:$0xf] %v2078
        %2143 = vst [vmem:[%s558 + $0x68] sm:$0xf] %v2079
        %2144 = vst [vmem:[%s558 + $0x6c] sm:$0xf] %v2080
        %2145 = vst [vmem:[%s558 + $0x70] sm:$0xf] %v2081
        %2146 = vst [vmem:[%s558 + $0x74] sm:$0xf] %v2082
        %2147 = vst [vmem:[%s558 + $0x78] sm:$0xf] %v2083
        %2148 = vst [vmem:[%s558 + $0x7c] sm:$0xf] %v2084
        %s2149 = sand.u32 %s305, 1
        %s2150 = scalar_lea.sflag [#allocation4], %s2149
        %s2151 = sand.u32 %s305, 1
        %s2152 = smul.addr %s2151, 128
        %s2153 = scalar_lea.vmem [#allocation16], %s2152
        // Predicated region
        $region101: #{tpu_custom_call.1} parent=67 // pred_check
          %p2154 = pneg %p315
        $region102: #{tpu_custom_call.1} parent=67 // pred_check_branch
          %2156 = sbr.rel (%p2154) target = $region104
        $region103: #{tpu_custom_call.1} parent=67 // pred_region
          %s2157 = smul.u32 32, %s35
          %s2159 = ssub.s32 2048, 2048
          %2160 = vsyncadd %s2150, %s2159
          %s2161 = smul.addr %s2157, 64
          %s2162 = scalar_lea.hbm %s12, %s2161
          %s2163 = sshll.u32 %s2153, 4
          %s2164 = int_to_ptr.vmem [resolvable:$true] %s2163
          %2169 = dma.vmem_to_hbm [thread:$0]  %s2164, 2048, %s2162, %s2150, 64, 64, 4
        $region104: #{tpu_custom_call.1} parent=67 // pred_fallthru
          _
      $region68: #{tpu_custom_call.1} parent=5 // pred_fallthru
        _
      %p2170 = scmp.le.s32.totalorder 2, %s30
      // Predicated region
      $region105: #{tpu_custom_call.1} parent=5 // pred_check
        %p2171 = pneg %p2170
      $region106: #{tpu_custom_call.1} parent=5 // pred_check_branch
        %2173 = sbr.rel (%p2171) target = $region108
      $region107: #{tpu_custom_call.1} parent=5 // pred_region
        %s2174 = ssub.s32 %s30, 2
        // Predicated region
        $region109: #{tpu_custom_call.1} parent=107 // pred_check
          %p2175 = pneg %p321
        $region110: #{tpu_custom_call.1} parent=107 // pred_check_branch
          %2177 = sbr.rel (%p2175) target = $region112
        $region111: #{tpu_custom_call.1} parent=107 // pred_region
          %s2178 = sand.u32 %s306, 1
          %s2179 = scalar_lea.sflag [#allocation4], %s2178
          %s2180 = sand.u32 %s306, 1
          %s2181 = smul.addr %s2180, 128
          %s2182 = scalar_lea.vmem [#allocation16], %s2181
          %2183 = dma.done %s2179, 2048
        $region112: #{tpu_custom_call.1} parent=107 // pred_fallthru
          _
      $region108: #{tpu_custom_call.1} parent=5 // pred_fallthru
        _
    $region6: #{tpu_custom_call.1} parent=1 // loop_footer
      %s34 = sadd.s32 1, %s30
    $region7: #{tpu_custom_call.1} parent=1 // loop_footer_branch
      %29 = sbr.rel target = $region3
    $region8: #{tpu_custom_call.1} parent=1 // loop_exit
      _
    %2184 = vsyncpa [#allocation3], 1
    %s2185 = scalar_lea.sflag [#allocation3], 1
    %2186 = vsyncpa %s2185, 1
    %2187 = vsyncpa [#allocation6], 1
    %s2188 = scalar_lea.sflag [#allocation6], 1
    %2189 = vsyncpa %s2188, 1
    %2190 = vsyncpa [#allocation9], 1
    %2191 = vsyncpa [#allocation12], 1
    %2192 = vsyncpa [#allocation15], 1
    %2193 = vsyncpa [#allocation4], 1
    %s2194 = scalar_lea.sflag [#allocation4], 1
    %2195 = vsyncpa %s2194, 1

</llo_original>
